<compile_context>
chip_gen: v5e
topology: v5e:2x2
jax: 0.10.0
libtpu: 0.0.40
codegen_flags: <defaults>
</compile_context>

<pallas_src>
import jax
import jax.numpy as jnp
from jax import lax
from jax.experimental import pallas as pl
from jax.experimental.pallas import tpu as pltpu

LN_EPS = 1e-5  # torch.nn.LayerNorm default


def _mlp_encoder_kernel(f_ref, w_ref, b_ref, g_ref, beta_ref, o_ref):
    """MLPEncoder.forward on the second batch-half (one sequence tile).

    f_ref    : (Bh, tL, C) VMEM  -- second-half feature tile
    w_ref    : (Bh, Bh)    SMEM  -- linear1.weight (out_features x in_features)
    b_ref    : (Bh,)       SMEM  -- linear1.bias
    g_ref    : (1, C)      VMEM  -- norm1.weight (gamma)
    beta_ref : (1, C)      VMEM  -- norm1.bias   (beta)
    o_ref    : (Bh, tL, C) VMEM  -- output tile (aliased second half of feature)
    """
    Bh, tL, C = f_ref.shape
    inv_c = jnp.float32(1.0 / C)

    gamma = g_ref[...].astype(jnp.float32)[None]   # (1, 1, C)
    beta = beta_ref[...].astype(jnp.float32)[None]  # (1, 1, C)

    # Linear over the *batch* axis on the VPU:
    #   src2[i, l, c] = bias[i] + sum_j W[i, j] * f[j, l, c]
    # (== transpose(src,0,2) -> Linear(Bh,Bh) -> transpose back).  Bh=8 is far
    # too small for the MXU; scalar weights come straight from SMEM.
    # Rows are read per-j (short live ranges; cheap VMEM reloads if they spill).
    f_rows = [f_ref[j].astype(jnp.float32) for j in range(Bh)]   # Bh x (tL, C)

    y_rows = []
    for i in range(Bh):
        acc = b_ref[i] + w_ref[i, 0] * f_rows[0]
        for j in range(1, Bh):
            acc = acc + w_ref[i, j] * f_rows[j]
        # residual add (dropout1 treated as identity -- deterministic kernel)
        # TODO(synk): torch Dropout(p=0.1) in training mode is stochastic; omitted.
        y_rows.append(f_rows[i] + acc)                           # (tL, C)

    y = jnp.stack(y_rows, axis=0)                                # (Bh, tL, C)

    # Single-pass LayerNorm over C for the whole tile (biased var, eps, affine).
    s1 = jnp.sum(y, axis=-1, keepdims=True)                      # (Bh, tL, 1)
    s2 = jnp.sum(y * y, axis=-1, keepdims=True)                  # (Bh, tL, 1)
    mean = s1 * inv_c
    var = jnp.maximum(s2 * inv_c - mean * mean, 0.0)             # clamp: no NaNs
    y_hat = (y - mean) * lax.rsqrt(var + LN_EPS)

    o_ref[...] = (y_hat * gamma + beta).astype(o_ref.dtype)      # one dense store


def _pick_tile_l(L):
    """Sequence-axis tile: full L when small (single step), else a divisor
    that keeps the resident VMEM set modest and satisfies the (8,128) rule."""
    if L <= 128:
        return L
    for t in (128, 64, 32, 16, 8):
        if L % t == 0:
            return t
    return L  # odd L (e.g. 197): fall back to the full dim (still legal)


def transformer_decorator1_forward(feature, w, b, gamma, beta):
    """TransformerDecorator1.forward, training branch, add_bt=3, mlp_enc=1.

    feature : (B, L, C); w : (B//2, B//2); b : (B//2,); gamma, beta : (C,)
    Returns (B, L, C) = concat([feature[:B//2], MLPEncoder(feature[B//2:])]),
    realized in place via input/output aliasing (no concatenate, no copy of the
    untouched first half when the caller donates `feature`).
    """
    B, L, C = feature.shape
    assert B % 2 == 0, "batch must be even for the add_bt half split"
    Bh = B // 2

    tL = _pick_tile_l(L)
    grid = (L // tL,)

    gamma2 = gamma.reshape(1, C)
    beta2 = beta.reshape(1, C)

    itemsize = jnp.dtype(feature.dtype).itemsize
    cost = pl.CostEstimate(
        flops=2 * Bh * Bh * L * C + 10 * Bh * L * C,     # batch mix + LN arith
        transcendentals=Bh * L,                          # rsqrt per (i, l)
        bytes_accessed=2 * Bh * L * C * itemsize + (Bh * Bh + Bh + 2 * C) * 4,
    )

    return pl.pallas_call(
        _mlp_encoder_kernel,
        out_shape=jax.ShapeDtypeStruct((B, L, C), feature.dtype),
        grid_spec=pltpu.PrefetchScalarGridSpec(
            num_scalar_prefetch=0,
            grid=grid,
            in_specs=[
                # second batch-half of the full feature buffer, tiled along L
                pl.BlockSpec((Bh, tL, C), lambda l: (1, l, 0)),
                # tiny params as SMEM scalars (consumed by the VPU formulation)
                pl.BlockSpec(memory_space=pltpu.MemorySpace.SMEM),  # w  (Bh, Bh)
                pl.BlockSpec(memory_space=pltpu.MemorySpace.SMEM),  # b  (Bh,)
                pl.BlockSpec((1, C), lambda l: (0, 0)),             # gamma
                pl.BlockSpec((1, C), lambda l: (0, 0)),             # beta
            ],
            # only the second batch-half is written back; the aliased first
            # half keeps the original feature rows (== old_feature).
            out_specs=pl.BlockSpec((Bh, tL, C), lambda l: (1, l, 0)),
        ),
        input_output_aliases={0: 0},
        cost_estimate=cost,
        compiler_params=pltpu.CompilerParams(
            # sequence tiles are independent -> shard across TCs (v7x megacore)
            dimension_semantics=("parallel",),
        ),
    )(feature, w, b, gamma2, beta2)


# Donating the feature buffer lets the alias be realized with zero extra copies.
# (If the caller cannot donate, XLA inserts a defensive copy -- correct, slower.)
forward = jax.jit(transformer_decorator1_forward, donate_argnums=(0,))


def _reference(feature, w, b, gamma, beta):
    """Pure-JAX reference mirroring the PyTorch semantics (dropout=identity)."""
    B = feature.shape[0]
    old = feature[: B // 2]
    f = feature[-(B // 2):]
    src2 = jnp.einsum("ij,jlc->ilc", w, f) + b[:, None, None]
    y = f + src2
    mean = jnp.mean(y, axis=-1, keepdims=True)
    var = jnp.mean((y - mean) ** 2, axis=-1, keepdims=True)
    y = (y - mean) / jnp.sqrt(var + LN_EPS) * gamma[None, None, :] + beta[None, None, :]
    return jnp.concatenate([old, y], axis=0)


if __name__ == "__main__":
    key = jax.random.PRNGKey(0)
    k_x, k_w, k_b = jax.random.split(key, 3)

    # Small shapes consistent with the module: feature (B, L, C) = (16, 16, 128)
    # MLPEncoder(d_model=C=128, batch_size=Bh=8) -> Linear(8, 8), LayerNorm(128)
    B, L, C = 16, 16, 128
    Bh = B // 2

    feature = jax.random.normal(k_x, (B, L, C), dtype=jnp.float32)

    # Deterministic synthetic parameters
    w = jax.random.normal(k_w, (Bh, Bh), dtype=jnp.float32) * 0.1   # linear1.weight
    b = jax.random.normal(k_b, (Bh,), dtype=jnp.float32) * 0.1      # linear1.bias
    gamma = jnp.ones((C,), dtype=jnp.float32)                       # norm1.weight
    beta = jnp.zeros((C,), dtype=jnp.float32)                       # norm1.bias

    # ---- f32 path (tight tolerance). Reference first: `feature` is donated. ----
    ref = jax.block_until_ready(_reference(feature, w, b, gamma, beta))
    out = jax.block_until_ready(forward(feature, w, b, gamma, beta))
    assert out.shape == (B, L, C), out.shape
    assert jnp.allclose(out, ref, atol=1e-4, rtol=1e-4), "f32 mismatch vs reference"

    # ---- bf16 I/O path (memory-bound win; math stays f32 inside the kernel). ----
    feature_bf = jax.random.normal(k_x, (B, L, C), dtype=jnp.float32).astype(jnp.bfloat16)
    ref_bf = jax.block_until_ready(
        _reference(feature_bf.astype(jnp.float32), w, b, gamma, beta))
    out_bf = jax.block_until_ready(forward(feature_bf, w, b, gamma, beta))
    assert out_bf.dtype == jnp.bfloat16
    assert jnp.allclose(out_bf.astype(jnp.float32), ref_bf, atol=3e-2, rtol=3e-2), \
        "bf16 mismatch vs reference"

    print("KERNEL_OK")
</pallas_src>

<mosaic_0001>
module attributes {stable_mosaic.version = 11 : i64} {
  func.func @_mlp_encoder_kernel(%arg0: i32, %arg1: memref<8x16x128xf32, #tpu.memory_space<vmem>>, %arg2: memref<8x8xf32, #tpu.memory_space<smem>>, %arg3: memref<8xf32, #tpu.memory_space<smem>>, %arg4: memref<1x128xf32, #tpu.memory_space<vmem>>, %arg5: memref<1x128xf32, #tpu.memory_space<vmem>>, %arg6: memref<8x16x128xf32, #tpu.memory_space<vmem>>) attributes {dimension_semantics = [#tpu.dimension_semantics<parallel>], iteration_bounds = array<i64: 1>, scalar_prefetch = 0 : i64, scratch_operands = 0 : i64, tpu.core_type = #tpu.core_type<tc>, window_params = [{transform_indices = @transform_0, window_bounds = array<i64: 8, 16, 128>}, {transform_indices = @transform_1, window_bounds = array<i64: 8, 8>}, {transform_indices = @transform_2, window_bounds = array<i64: 8>}, {pipeline_mode = #tpu.pipeline_mode<synchronous>, transform_indices = @transform_3, window_bounds = array<i64: 1, 128>}, {pipeline_mode = #tpu.pipeline_mode<synchronous>, transform_indices = @transform_4, window_bounds = array<i64: 1, 128>}, {transform_indices = @transform_5, window_bounds = array<i64: 8, 16, 128>}]} {
    %c0 = arith.constant 0 : index
    %c0_0 = arith.constant 0 : index
    %0 = vector.load %arg4[%c0, %c0_0] : memref<1x128xf32, #tpu.memory_space<vmem>>, vector<1x128xf32>
    %1 = vector.shape_cast %0 : vector<1x128xf32> to vector<1x1x128xf32>
    %c0_1 = arith.constant 0 : index
    %c0_2 = arith.constant 0 : index
    %2 = vector.load %arg5[%c0_1, %c0_2] : memref<1x128xf32, #tpu.memory_space<vmem>>, vector<1x128xf32>
    %3 = vector.shape_cast %2 : vector<1x128xf32> to vector<1x1x128xf32>
    %c0_3 = arith.constant 0 : index
    %c0_4 = arith.constant 0 : index
    %c0_5 = arith.constant 0 : index
    %4 = vector.load %arg1[%c0_3, %c0_4, %c0_5] : memref<8x16x128xf32, #tpu.memory_space<vmem>>, vector<1x16x128xf32>
    %5 = vector.shape_cast %4 : vector<1x16x128xf32> to vector<16x128xf32>
    %c1 = arith.constant 1 : index
    %c0_6 = arith.constant 0 : index
    %c0_7 = arith.constant 0 : index
    %6 = vector.load %arg1[%c1, %c0_6, %c0_7] : memref<8x16x128xf32, #tpu.memory_space<vmem>>, vector<1x16x128xf32>
    %7 = vector.shape_cast %6 : vector<1x16x128xf32> to vector<16x128xf32>
    %c2 = arith.constant 2 : index
    %c0_8 = arith.constant 0 : index
    %c0_9 = arith.constant 0 : index
    %8 = vector.load %arg1[%c2, %c0_8, %c0_9] : memref<8x16x128xf32, #tpu.memory_space<vmem>>, vector<1x16x128xf32>
    %9 = vector.shape_cast %8 : vector<1x16x128xf32> to vector<16x128xf32>
    %c3 = arith.constant 3 : index
    %c0_10 = arith.constant 0 : index
    %c0_11 = arith.constant 0 : index
    %10 = vector.load %arg1[%c3, %c0_10, %c0_11] : memref<8x16x128xf32, #tpu.memory_space<vmem>>, vector<1x16x128xf32>
    %11 = vector.shape_cast %10 : vector<1x16x128xf32> to vector<16x128xf32>
    %c4 = arith.constant 4 : index
    %c0_12 = arith.constant 0 : index
    %c0_13 = arith.constant 0 : index
    %12 = vector.load %arg1[%c4, %c0_12, %c0_13] : memref<8x16x128xf32, #tpu.memory_space<vmem>>, vector<1x16x128xf32>
    %13 = vector.shape_cast %12 : vector<1x16x128xf32> to vector<16x128xf32>
    %c5 = arith.constant 5 : index
    %c0_14 = arith.constant 0 : index
    %c0_15 = arith.constant 0 : index
    %14 = vector.load %arg1[%c5, %c0_14, %c0_15] : memref<8x16x128xf32, #tpu.memory_space<vmem>>, vector<1x16x128xf32>
    %15 = vector.shape_cast %14 : vector<1x16x128xf32> to vector<16x128xf32>
    %c6 = arith.constant 6 : index
    %c0_16 = arith.constant 0 : index
    %c0_17 = arith.constant 0 : index
    %16 = vector.load %arg1[%c6, %c0_16, %c0_17] : memref<8x16x128xf32, #tpu.memory_space<vmem>>, vector<1x16x128xf32>
    %17 = vector.shape_cast %16 : vector<1x16x128xf32> to vector<16x128xf32>
    %c7 = arith.constant 7 : index
    %c0_18 = arith.constant 0 : index
    %c0_19 = arith.constant 0 : index
    %18 = vector.load %arg1[%c7, %c0_18, %c0_19] : memref<8x16x128xf32, #tpu.memory_space<vmem>>, vector<1x16x128xf32>
    %19 = vector.shape_cast %18 : vector<1x16x128xf32> to vector<16x128xf32>
    %c0_20 = arith.constant 0 : index
    %20 = memref.load %arg3[%c0_20] : memref<8xf32, #tpu.memory_space<smem>>
    %c0_21 = arith.constant 0 : index
    %c0_22 = arith.constant 0 : index
    %21 = memref.load %arg2[%c0_21, %c0_22] : memref<8x8xf32, #tpu.memory_space<smem>>
    %22 = vector.broadcast %21 : f32 to vector<16x128xf32>
    %23 = arith.mulf %22, %5 : vector<16x128xf32>
    %24 = vector.broadcast %20 : f32 to vector<16x128xf32>
    %25 = arith.addf %24, %23 : vector<16x128xf32>
    %c0_23 = arith.constant 0 : index
    %c1_24 = arith.constant 1 : index
    %26 = memref.load %arg2[%c0_23, %c1_24] : memref<8x8xf32, #tpu.memory_space<smem>>
    %27 = vector.broadcast %26 : f32 to vector<16x128xf32>
    %28 = arith.mulf %27, %7 : vector<16x128xf32>
    %29 = arith.addf %25, %28 : vector<16x128xf32>
    %c0_25 = arith.constant 0 : index
    %c2_26 = arith.constant 2 : index
    %30 = memref.load %arg2[%c0_25, %c2_26] : memref<8x8xf32, #tpu.memory_space<smem>>
    %31 = vector.broadcast %30 : f32 to vector<16x128xf32>
    %32 = arith.mulf %31, %9 : vector<16x128xf32>
    %33 = arith.addf %29, %32 : vector<16x128xf32>
    %c0_27 = arith.constant 0 : index
    %c3_28 = arith.constant 3 : index
    %34 = memref.load %arg2[%c0_27, %c3_28] : memref<8x8xf32, #tpu.memory_space<smem>>
    %35 = vector.broadcast %34 : f32 to vector<16x128xf32>
    %36 = arith.mulf %35, %11 : vector<16x128xf32>
    %37 = arith.addf %33, %36 : vector<16x128xf32>
    %c0_29 = arith.constant 0 : index
    %c4_30 = arith.constant 4 : index
    %38 = memref.load %arg2[%c0_29, %c4_30] : memref<8x8xf32, #tpu.memory_space<smem>>
    %39 = vector.broadcast %38 : f32 to vector<16x128xf32>
    %40 = arith.mulf %39, %13 : vector<16x128xf32>
    %41 = arith.addf %37, %40 : vector<16x128xf32>
    %c0_31 = arith.constant 0 : index
    %c5_32 = arith.constant 5 : index
    %42 = memref.load %arg2[%c0_31, %c5_32] : memref<8x8xf32, #tpu.memory_space<smem>>
    %43 = vector.broadcast %42 : f32 to vector<16x128xf32>
    %44 = arith.mulf %43, %15 : vector<16x128xf32>
    %45 = arith.addf %41, %44 : vector<16x128xf32>
    %c0_33 = arith.constant 0 : index
    %c6_34 = arith.constant 6 : index
    %46 = memref.load %arg2[%c0_33, %c6_34] : memref<8x8xf32, #tpu.memory_space<smem>>
    %47 = vector.broadcast %46 : f32 to vector<16x128xf32>
    %48 = arith.mulf %47, %17 : vector<16x128xf32>
    %49 = arith.addf %45, %48 : vector<16x128xf32>
    %c0_35 = arith.constant 0 : index
    %c7_36 = arith.constant 7 : index
    %50 = memref.load %arg2[%c0_35, %c7_36] : memref<8x8xf32, #tpu.memory_space<smem>>
    %51 = vector.broadcast %50 : f32 to vector<16x128xf32>
    %52 = arith.mulf %51, %19 : vector<16x128xf32>
    %53 = arith.addf %49, %52 : vector<16x128xf32>
    %54 = arith.addf %5, %53 : vector<16x128xf32>
    %c1_37 = arith.constant 1 : index
    %55 = memref.load %arg3[%c1_37] : memref<8xf32, #tpu.memory_space<smem>>
    %c1_38 = arith.constant 1 : index
    %c0_39 = arith.constant 0 : index
    %56 = memref.load %arg2[%c1_38, %c0_39] : memref<8x8xf32, #tpu.memory_space<smem>>
    %57 = vector.broadcast %56 : f32 to vector<16x128xf32>
    %58 = arith.mulf %57, %5 : vector<16x128xf32>
    %59 = vector.broadcast %55 : f32 to vector<16x128xf32>
    %60 = arith.addf %59, %58 : vector<16x128xf32>
    %c1_40 = arith.constant 1 : index
    %c1_41 = arith.constant 1 : index
    %61 = memref.load %arg2[%c1_40, %c1_41] : memref<8x8xf32, #tpu.memory_space<smem>>
    %62 = vector.broadcast %61 : f32 to vector<16x128xf32>
    %63 = arith.mulf %62, %7 : vector<16x128xf32>
    %64 = arith.addf %60, %63 : vector<16x128xf32>
    %c1_42 = arith.constant 1 : index
    %c2_43 = arith.constant 2 : index
    %65 = memref.load %arg2[%c1_42, %c2_43] : memref<8x8xf32, #tpu.memory_space<smem>>
    %66 = vector.broadcast %65 : f32 to vector<16x128xf32>
    %67 = arith.mulf %66, %9 : vector<16x128xf32>
    %68 = arith.addf %64, %67 : vector<16x128xf32>
    %c1_44 = arith.constant 1 : index
    %c3_45 = arith.constant 3 : index
    %69 = memref.load %arg2[%c1_44, %c3_45] : memref<8x8xf32, #tpu.memory_space<smem>>
    %70 = vector.broadcast %69 : f32 to vector<16x128xf32>
    %71 = arith.mulf %70, %11 : vector<16x128xf32>
    %72 = arith.addf %68, %71 : vector<16x128xf32>
    %c1_46 = arith.constant 1 : index
    %c4_47 = arith.constant 4 : index
    %73 = memref.load %arg2[%c1_46, %c4_47] : memref<8x8xf32, #tpu.memory_space<smem>>
    %74 = vector.broadcast %73 : f32 to vector<16x128xf32>
    %75 = arith.mulf %74, %13 : vector<16x128xf32>
    %76 = arith.addf %72, %75 : vector<16x128xf32>
    %c1_48 = arith.constant 1 : index
    %c5_49 = arith.constant 5 : index
    %77 = memref.load %arg2[%c1_48, %c5_49] : memref<8x8xf32, #tpu.memory_space<smem>>
    %78 = vector.broadcast %77 : f32 to vector<16x128xf32>
    %79 = arith.mulf %78, %15 : vector<16x128xf32>
    %80 = arith.addf %76, %79 : vector<16x128xf32>
    %c1_50 = arith.constant 1 : index
    %c6_51 = arith.constant 6 : index
    %81 = memref.load %arg2[%c1_50, %c6_51] : memref<8x8xf32, #tpu.memory_space<smem>>
    %82 = vector.broadcast %81 : f32 to vector<16x128xf32>
    %83 = arith.mulf %82, %17 : vector<16x128xf32>
    %84 = arith.addf %80, %83 : vector<16x128xf32>
    %c1_52 = arith.constant 1 : index
    %c7_53 = arith.constant 7 : index
    %85 = memref.load %arg2[%c1_52, %c7_53] : memref<8x8xf32, #tpu.memory_space<smem>>
    %86 = vector.broadcast %85 : f32 to vector<16x128xf32>
    %87 = arith.mulf %86, %19 : vector<16x128xf32>
    %88 = arith.addf %84, %87 : vector<16x128xf32>
    %89 = arith.addf %7, %88 : vector<16x128xf32>
    %c2_54 = arith.constant 2 : index
    %90 = memref.load %arg3[%c2_54] : memref<8xf32, #tpu.memory_space<smem>>
    %c2_55 = arith.constant 2 : index
    %c0_56 = arith.constant 0 : index
    %91 = memref.load %arg2[%c2_55, %c0_56] : memref<8x8xf32, #tpu.memory_space<smem>>
    %92 = vector.broadcast %91 : f32 to vector<16x128xf32>
    %93 = arith.mulf %92, %5 : vector<16x128xf32>
    %94 = vector.broadcast %90 : f32 to vector<16x128xf32>
    %95 = arith.addf %94, %93 : vector<16x128xf32>
    %c2_57 = arith.constant 2 : index
    %c1_58 = arith.constant 1 : index
    %96 = memref.load %arg2[%c2_57, %c1_58] : memref<8x8xf32, #tpu.memory_space<smem>>
    %97 = vector.broadcast %96 : f32 to vector<16x128xf32>
    %98 = arith.mulf %97, %7 : vector<16x128xf32>
    %99 = arith.addf %95, %98 : vector<16x128xf32>
    %c2_59 = arith.constant 2 : index
    %c2_60 = arith.constant 2 : index
    %100 = memref.load %arg2[%c2_59, %c2_60] : memref<8x8xf32, #tpu.memory_space<smem>>
    %101 = vector.broadcast %100 : f32 to vector<16x128xf32>
    %102 = arith.mulf %101, %9 : vector<16x128xf32>
    %103 = arith.addf %99, %102 : vector<16x128xf32>
    %c2_61 = arith.constant 2 : index
    %c3_62 = arith.constant 3 : index
    %104 = memref.load %arg2[%c2_61, %c3_62] : memref<8x8xf32, #tpu.memory_space<smem>>
    %105 = vector.broadcast %104 : f32 to vector<16x128xf32>
    %106 = arith.mulf %105, %11 : vector<16x128xf32>
    %107 = arith.addf %103, %106 : vector<16x128xf32>
    %c2_63 = arith.constant 2 : index
    %c4_64 = arith.constant 4 : index
    %108 = memref.load %arg2[%c2_63, %c4_64] : memref<8x8xf32, #tpu.memory_space<smem>>
    %109 = vector.broadcast %108 : f32 to vector<16x128xf32>
    %110 = arith.mulf %109, %13 : vector<16x128xf32>
    %111 = arith.addf %107, %110 : vector<16x128xf32>
    %c2_65 = arith.constant 2 : index
    %c5_66 = arith.constant 5 : index
    %112 = memref.load %arg2[%c2_65, %c5_66] : memref<8x8xf32, #tpu.memory_space<smem>>
    %113 = vector.broadcast %112 : f32 to vector<16x128xf32>
    %114 = arith.mulf %113, %15 : vector<16x128xf32>
    %115 = arith.addf %111, %114 : vector<16x128xf32>
    %c2_67 = arith.constant 2 : index
    %c6_68 = arith.constant 6 : index
    %116 = memref.load %arg2[%c2_67, %c6_68] : memref<8x8xf32, #tpu.memory_space<smem>>
    %117 = vector.broadcast %116 : f32 to vector<16x128xf32>
    %118 = arith.mulf %117, %17 : vector<16x128xf32>
    %119 = arith.addf %115, %118 : vector<16x128xf32>
    %c2_69 = arith.constant 2 : index
    %c7_70 = arith.constant 7 : index
    %120 = memref.load %arg2[%c2_69, %c7_70] : memref<8x8xf32, #tpu.memory_space<smem>>
    %121 = vector.broadcast %120 : f32 to vector<16x128xf32>
    %122 = arith.mulf %121, %19 : vector<16x128xf32>
    %123 = arith.addf %119, %122 : vector<16x128xf32>
    %124 = arith.addf %9, %123 : vector<16x128xf32>
    %c3_71 = arith.constant 3 : index
    %125 = memref.load %arg3[%c3_71] : memref<8xf32, #tpu.memory_space<smem>>
    %c3_72 = arith.constant 3 : index
    %c0_73 = arith.constant 0 : index
    %126 = memref.load %arg2[%c3_72, %c0_73] : memref<8x8xf32, #tpu.memory_space<smem>>
    %127 = vector.broadcast %126 : f32 to vector<16x128xf32>
    %128 = arith.mulf %127, %5 : vector<16x128xf32>
    %129 = vector.broadcast %125 : f32 to vector<16x128xf32>
    %130 = arith.addf %129, %128 : vector<16x128xf32>
    %c3_74 = arith.constant 3 : index
    %c1_75 = arith.constant 1 : index
    %131 = memref.load %arg2[%c3_74, %c1_75] : memref<8x8xf32, #tpu.memory_space<smem>>
    %132 = vector.broadcast %131 : f32 to vector<16x128xf32>
    %133 = arith.mulf %132, %7 : vector<16x128xf32>
    %134 = arith.addf %130, %133 : vector<16x128xf32>
    %c3_76 = arith.constant 3 : index
    %c2_77 = arith.constant 2 : index
    %135 = memref.load %arg2[%c3_76, %c2_77] : memref<8x8xf32, #tpu.memory_space<smem>>
    %136 = vector.broadcast %135 : f32 to vector<16x128xf32>
    %137 = arith.mulf %136, %9 : vector<16x128xf32>
    %138 = arith.addf %134, %137 : vector<16x128xf32>
    %c3_78 = arith.constant 3 : index
    %c3_79 = arith.constant 3 : index
    %139 = memref.load %arg2[%c3_78, %c3_79] : memref<8x8xf32, #tpu.memory_space<smem>>
    %140 = vector.broadcast %139 : f32 to vector<16x128xf32>
    %141 = arith.mulf %140, %11 : vector<16x128xf32>
    %142 = arith.addf %138, %141 : vector<16x128xf32>
    %c3_80 = arith.constant 3 : index
    %c4_81 = arith.constant 4 : index
    %143 = memref.load %arg2[%c3_80, %c4_81] : memref<8x8xf32, #tpu.memory_space<smem>>
    %144 = vector.broadcast %143 : f32 to vector<16x128xf32>
    %145 = arith.mulf %144, %13 : vector<16x128xf32>
    %146 = arith.addf %142, %145 : vector<16x128xf32>
    %c3_82 = arith.constant 3 : index
    %c5_83 = arith.constant 5 : index
    %147 = memref.load %arg2[%c3_82, %c5_83] : memref<8x8xf32, #tpu.memory_space<smem>>
    %148 = vector.broadcast %147 : f32 to vector<16x128xf32>
    %149 = arith.mulf %148, %15 : vector<16x128xf32>
    %150 = arith.addf %146, %149 : vector<16x128xf32>
    %c3_84 = arith.constant 3 : index
    %c6_85 = arith.constant 6 : index
    %151 = memref.load %arg2[%c3_84, %c6_85] : memref<8x8xf32, #tpu.memory_space<smem>>
    %152 = vector.broadcast %151 : f32 to vector<16x128xf32>
    %153 = arith.mulf %152, %17 : vector<16x128xf32>
    %154 = arith.addf %150, %153 : vector<16x128xf32>
    %c3_86 = arith.constant 3 : index
    %c7_87 = arith.constant 7 : index
    %155 = memref.load %arg2[%c3_86, %c7_87] : memref<8x8xf32, #tpu.memory_space<smem>>
    %156 = vector.broadcast %155 : f32 to vector<16x128xf32>
    %157 = arith.mulf %156, %19 : vector<16x128xf32>
    %158 = arith.addf %154, %157 : vector<16x128xf32>
    %159 = arith.addf %11, %158 : vector<16x128xf32>
    %c4_88 = arith.constant 4 : index
    %160 = memref.load %arg3[%c4_88] : memref<8xf32, #tpu.memory_space<smem>>
    %c4_89 = arith.constant 4 : index
    %c0_90 = arith.constant 0 : index
    %161 = memref.load %arg2[%c4_89, %c0_90] : memref<8x8xf32, #tpu.memory_space<smem>>
    %162 = vector.broadcast %161 : f32 to vector<16x128xf32>
    %163 = arith.mulf %162, %5 : vector<16x128xf32>
    %164 = vector.broadcast %160 : f32 to vector<16x128xf32>
    %165 = arith.addf %164, %163 : vector<16x128xf32>
    %c4_91 = arith.constant 4 : index
    %c1_92 = arith.constant 1 : index
    %166 = memref.load %arg2[%c4_91, %c1_92] : memref<8x8xf32, #tpu.memory_space<smem>>
    %167 = vector.broadcast %166 : f32 to vector<16x128xf32>
    %168 = arith.mulf %167, %7 : vector<16x128xf32>
    %169 = arith.addf %165, %168 : vector<16x128xf32>
    %c4_93 = arith.constant 4 : index
    %c2_94 = arith.constant 2 : index
    %170 = memref.load %arg2[%c4_93, %c2_94] : memref<8x8xf32, #tpu.memory_space<smem>>
    %171 = vector.broadcast %170 : f32 to vector<16x128xf32>
    %172 = arith.mulf %171, %9 : vector<16x128xf32>
    %173 = arith.addf %169, %172 : vector<16x128xf32>
    %c4_95 = arith.constant 4 : index
    %c3_96 = arith.constant 3 : index
    %174 = memref.load %arg2[%c4_95, %c3_96] : memref<8x8xf32, #tpu.memory_space<smem>>
    %175 = vector.broadcast %174 : f32 to vector<16x128xf32>
    %176 = arith.mulf %175, %11 : vector<16x128xf32>
    %177 = arith.addf %173, %176 : vector<16x128xf32>
    %c4_97 = arith.constant 4 : index
    %c4_98 = arith.constant 4 : index
    %178 = memref.load %arg2[%c4_97, %c4_98] : memref<8x8xf32, #tpu.memory_space<smem>>
    %179 = vector.broadcast %178 : f32 to vector<16x128xf32>
    %180 = arith.mulf %179, %13 : vector<16x128xf32>
    %181 = arith.addf %177, %180 : vector<16x128xf32>
    %c4_99 = arith.constant 4 : index
    %c5_100 = arith.constant 5 : index
    %182 = memref.load %arg2[%c4_99, %c5_100] : memref<8x8xf32, #tpu.memory_space<smem>>
    %183 = vector.broadcast %182 : f32 to vector<16x128xf32>
    %184 = arith.mulf %183, %15 : vector<16x128xf32>
    %185 = arith.addf %181, %184 : vector<16x128xf32>
    %c4_101 = arith.constant 4 : index
    %c6_102 = arith.constant 6 : index
    %186 = memref.load %arg2[%c4_101, %c6_102] : memref<8x8xf32, #tpu.memory_space<smem>>
    %187 = vector.broadcast %186 : f32 to vector<16x128xf32>
    %188 = arith.mulf %187, %17 : vector<16x128xf32>
    %189 = arith.addf %185, %188 : vector<16x128xf32>
    %c4_103 = arith.constant 4 : index
    %c7_104 = arith.constant 7 : index
    %190 = memref.load %arg2[%c4_103, %c7_104] : memref<8x8xf32, #tpu.memory_space<smem>>
    %191 = vector.broadcast %190 : f32 to vector<16x128xf32>
    %192 = arith.mulf %191, %19 : vector<16x128xf32>
    %193 = arith.addf %189, %192 : vector<16x128xf32>
    %194 = arith.addf %13, %193 : vector<16x128xf32>
    %c5_105 = arith.constant 5 : index
    %195 = memref.load %arg3[%c5_105] : memref<8xf32, #tpu.memory_space<smem>>
    %c5_106 = arith.constant 5 : index
    %c0_107 = arith.constant 0 : index
    %196 = memref.load %arg2[%c5_106, %c0_107] : memref<8x8xf32, #tpu.memory_space<smem>>
    %197 = vector.broadcast %196 : f32 to vector<16x128xf32>
    %198 = arith.mulf %197, %5 : vector<16x128xf32>
    %199 = vector.broadcast %195 : f32 to vector<16x128xf32>
    %200 = arith.addf %199, %198 : vector<16x128xf32>
    %c5_108 = arith.constant 5 : index
    %c1_109 = arith.constant 1 : index
    %201 = memref.load %arg2[%c5_108, %c1_109] : memref<8x8xf32, #tpu.memory_space<smem>>
    %202 = vector.broadcast %201 : f32 to vector<16x128xf32>
    %203 = arith.mulf %202, %7 : vector<16x128xf32>
    %204 = arith.addf %200, %203 : vector<16x128xf32>
    %c5_110 = arith.constant 5 : index
    %c2_111 = arith.constant 2 : index
    %205 = memref.load %arg2[%c5_110, %c2_111] : memref<8x8xf32, #tpu.memory_space<smem>>
    %206 = vector.broadcast %205 : f32 to vector<16x128xf32>
    %207 = arith.mulf %206, %9 : vector<16x128xf32>
    %208 = arith.addf %204, %207 : vector<16x128xf32>
    %c5_112 = arith.constant 5 : index
    %c3_113 = arith.constant 3 : index
    %209 = memref.load %arg2[%c5_112, %c3_113] : memref<8x8xf32, #tpu.memory_space<smem>>
    %210 = vector.broadcast %209 : f32 to vector<16x128xf32>
    %211 = arith.mulf %210, %11 : vector<16x128xf32>
    %212 = arith.addf %208, %211 : vector<16x128xf32>
    %c5_114 = arith.constant 5 : index
    %c4_115 = arith.constant 4 : index
    %213 = memref.load %arg2[%c5_114, %c4_115] : memref<8x8xf32, #tpu.memory_space<smem>>
    %214 = vector.broadcast %213 : f32 to vector<16x128xf32>
    %215 = arith.mulf %214, %13 : vector<16x128xf32>
    %216 = arith.addf %212, %215 : vector<16x128xf32>
    %c5_116 = arith.constant 5 : index
    %c5_117 = arith.constant 5 : index
    %217 = memref.load %arg2[%c5_116, %c5_117] : memref<8x8xf32, #tpu.memory_space<smem>>
    %218 = vector.broadcast %217 : f32 to vector<16x128xf32>
    %219 = arith.mulf %218, %15 : vector<16x128xf32>
    %220 = arith.addf %216, %219 : vector<16x128xf32>
    %c5_118 = arith.constant 5 : index
    %c6_119 = arith.constant 6 : index
    %221 = memref.load %arg2[%c5_118, %c6_119] : memref<8x8xf32, #tpu.memory_space<smem>>
    %222 = vector.broadcast %221 : f32 to vector<16x128xf32>
    %223 = arith.mulf %222, %17 : vector<16x128xf32>
    %224 = arith.addf %220, %223 : vector<16x128xf32>
    %c5_120 = arith.constant 5 : index
    %c7_121 = arith.constant 7 : index
    %225 = memref.load %arg2[%c5_120, %c7_121] : memref<8x8xf32, #tpu.memory_space<smem>>
    %226 = vector.broadcast %225 : f32 to vector<16x128xf32>
    %227 = arith.mulf %226, %19 : vector<16x128xf32>
    %228 = arith.addf %224, %227 : vector<16x128xf32>
    %229 = arith.addf %15, %228 : vector<16x128xf32>
    %c6_122 = arith.constant 6 : index
    %230 = memref.load %arg3[%c6_122] : memref<8xf32, #tpu.memory_space<smem>>
    %c6_123 = arith.constant 6 : index
    %c0_124 = arith.constant 0 : index
    %231 = memref.load %arg2[%c6_123, %c0_124] : memref<8x8xf32, #tpu.memory_space<smem>>
    %232 = vector.broadcast %231 : f32 to vector<16x128xf32>
    %233 = arith.mulf %232, %5 : vector<16x128xf32>
    %234 = vector.broadcast %230 : f32 to vector<16x128xf32>
    %235 = arith.addf %234, %233 : vector<16x128xf32>
    %c6_125 = arith.constant 6 : index
    %c1_126 = arith.constant 1 : index
    %236 = memref.load %arg2[%c6_125, %c1_126] : memref<8x8xf32, #tpu.memory_space<smem>>
    %237 = vector.broadcast %236 : f32 to vector<16x128xf32>
    %238 = arith.mulf %237, %7 : vector<16x128xf32>
    %239 = arith.addf %235, %238 : vector<16x128xf32>
    %c6_127 = arith.constant 6 : index
    %c2_128 = arith.constant 2 : index
    %240 = memref.load %arg2[%c6_127, %c2_128] : memref<8x8xf32, #tpu.memory_space<smem>>
    %241 = vector.broadcast %240 : f32 to vector<16x128xf32>
    %242 = arith.mulf %241, %9 : vector<16x128xf32>
    %243 = arith.addf %239, %242 : vector<16x128xf32>
    %c6_129 = arith.constant 6 : index
    %c3_130 = arith.constant 3 : index
    %244 = memref.load %arg2[%c6_129, %c3_130] : memref<8x8xf32, #tpu.memory_space<smem>>
    %245 = vector.broadcast %244 : f32 to vector<16x128xf32>
    %246 = arith.mulf %245, %11 : vector<16x128xf32>
    %247 = arith.addf %243, %246 : vector<16x128xf32>
    %c6_131 = arith.constant 6 : index
    %c4_132 = arith.constant 4 : index
    %248 = memref.load %arg2[%c6_131, %c4_132] : memref<8x8xf32, #tpu.memory_space<smem>>
    %249 = vector.broadcast %248 : f32 to vector<16x128xf32>
    %250 = arith.mulf %249, %13 : vector<16x128xf32>
    %251 = arith.addf %247, %250 : vector<16x128xf32>
    %c6_133 = arith.constant 6 : index
    %c5_134 = arith.constant 5 : index
    %252 = memref.load %arg2[%c6_133, %c5_134] : memref<8x8xf32, #tpu.memory_space<smem>>
    %253 = vector.broadcast %252 : f32 to vector<16x128xf32>
    %254 = arith.mulf %253, %15 : vector<16x128xf32>
    %255 = arith.addf %251, %254 : vector<16x128xf32>
    %c6_135 = arith.constant 6 : index
    %c6_136 = arith.constant 6 : index
    %256 = memref.load %arg2[%c6_135, %c6_136] : memref<8x8xf32, #tpu.memory_space<smem>>
    %257 = vector.broadcast %256 : f32 to vector<16x128xf32>
    %258 = arith.mulf %257, %17 : vector<16x128xf32>
    %259 = arith.addf %255, %258 : vector<16x128xf32>
    %c6_137 = arith.constant 6 : index
    %c7_138 = arith.constant 7 : index
    %260 = memref.load %arg2[%c6_137, %c7_138] : memref<8x8xf32, #tpu.memory_space<smem>>
    %261 = vector.broadcast %260 : f32 to vector<16x128xf32>
    %262 = arith.mulf %261, %19 : vector<16x128xf32>
    %263 = arith.addf %259, %262 : vector<16x128xf32>
    %264 = arith.addf %17, %263 : vector<16x128xf32>
    %c7_139 = arith.constant 7 : index
    %265 = memref.load %arg3[%c7_139] : memref<8xf32, #tpu.memory_space<smem>>
    %c7_140 = arith.constant 7 : index
    %c0_141 = arith.constant 0 : index
    %266 = memref.load %arg2[%c7_140, %c0_141] : memref<8x8xf32, #tpu.memory_space<smem>>
    %267 = vector.broadcast %266 : f32 to vector<16x128xf32>
    %268 = arith.mulf %267, %5 : vector<16x128xf32>
    %269 = vector.broadcast %265 : f32 to vector<16x128xf32>
    %270 = arith.addf %269, %268 : vector<16x128xf32>
    %c7_142 = arith.constant 7 : index
    %c1_143 = arith.constant 1 : index
    %271 = memref.load %arg2[%c7_142, %c1_143] : memref<8x8xf32, #tpu.memory_space<smem>>
    %272 = vector.broadcast %271 : f32 to vector<16x128xf32>
    %273 = arith.mulf %272, %7 : vector<16x128xf32>
    %274 = arith.addf %270, %273 : vector<16x128xf32>
    %c7_144 = arith.constant 7 : index
    %c2_145 = arith.constant 2 : index
    %275 = memref.load %arg2[%c7_144, %c2_145] : memref<8x8xf32, #tpu.memory_space<smem>>
    %276 = vector.broadcast %275 : f32 to vector<16x128xf32>
    %277 = arith.mulf %276, %9 : vector<16x128xf32>
    %278 = arith.addf %274, %277 : vector<16x128xf32>
    %c7_146 = arith.constant 7 : index
    %c3_147 = arith.constant 3 : index
    %279 = memref.load %arg2[%c7_146, %c3_147] : memref<8x8xf32, #tpu.memory_space<smem>>
    %280 = vector.broadcast %279 : f32 to vector<16x128xf32>
    %281 = arith.mulf %280, %11 : vector<16x128xf32>
    %282 = arith.addf %278, %281 : vector<16x128xf32>
    %c7_148 = arith.constant 7 : index
    %c4_149 = arith.constant 4 : index
    %283 = memref.load %arg2[%c7_148, %c4_149] : memref<8x8xf32, #tpu.memory_space<smem>>
    %284 = vector.broadcast %283 : f32 to vector<16x128xf32>
    %285 = arith.mulf %284, %13 : vector<16x128xf32>
    %286 = arith.addf %282, %285 : vector<16x128xf32>
    %c7_150 = arith.constant 7 : index
    %c5_151 = arith.constant 5 : index
    %287 = memref.load %arg2[%c7_150, %c5_151] : memref<8x8xf32, #tpu.memory_space<smem>>
    %288 = vector.broadcast %287 : f32 to vector<16x128xf32>
    %289 = arith.mulf %288, %15 : vector<16x128xf32>
    %290 = arith.addf %286, %289 : vector<16x128xf32>
    %c7_152 = arith.constant 7 : index
    %c6_153 = arith.constant 6 : index
    %291 = memref.load %arg2[%c7_152, %c6_153] : memref<8x8xf32, #tpu.memory_space<smem>>
    %292 = vector.broadcast %291 : f32 to vector<16x128xf32>
    %293 = arith.mulf %292, %17 : vector<16x128xf32>
    %294 = arith.addf %290, %293 : vector<16x128xf32>
    %c7_154 = arith.constant 7 : index
    %c7_155 = arith.constant 7 : index
    %295 = memref.load %arg2[%c7_154, %c7_155] : memref<8x8xf32, #tpu.memory_space<smem>>
    %296 = vector.broadcast %295 : f32 to vector<16x128xf32>
    %297 = arith.mulf %296, %19 : vector<16x128xf32>
    %298 = arith.addf %294, %297 : vector<16x128xf32>
    %299 = arith.addf %19, %298 : vector<16x128xf32>
    %300 = vector.shape_cast %54 : vector<16x128xf32> to vector<1x16x128xf32>
    %301 = vector.shape_cast %89 : vector<16x128xf32> to vector<1x16x128xf32>
    %302 = vector.shape_cast %124 : vector<16x128xf32> to vector<1x16x128xf32>
    %303 = vector.shape_cast %159 : vector<16x128xf32> to vector<1x16x128xf32>
    %304 = vector.shape_cast %194 : vector<16x128xf32> to vector<1x16x128xf32>
    %305 = vector.shape_cast %229 : vector<16x128xf32> to vector<1x16x128xf32>
    %306 = vector.shape_cast %264 : vector<16x128xf32> to vector<1x16x128xf32>
    %307 = vector.shape_cast %299 : vector<16x128xf32> to vector<1x16x128xf32>
    %308 = tpu.concatenate %300, %301, %302, %303, %304, %305, %306, %307 in 0 : vector<1x16x128xf32>, vector<1x16x128xf32>, vector<1x16x128xf32>, vector<1x16x128xf32>, vector<1x16x128xf32>, vector<1x16x128xf32>, vector<1x16x128xf32>, vector<1x16x128xf32> -> vector<8x16x128xf32>
    %cst = arith.constant dense<0.000000e+00> : vector<8x16xf32>
    %309 = vector.multi_reduction <add>, %308, %cst [2] : vector<8x16x128xf32> to vector<8x16xf32>
    %310 = vector.shape_cast %309 : vector<8x16xf32> to vector<8x16x1xf32>
    %311 = arith.mulf %308, %308 : vector<8x16x128xf32>
    %cst_156 = arith.constant dense<0.000000e+00> : vector<8x16xf32>
    %312 = vector.multi_reduction <add>, %311, %cst_156 [2] : vector<8x16x128xf32> to vector<8x16xf32>
    %313 = vector.shape_cast %312 : vector<8x16xf32> to vector<8x16x1xf32>
    %cst_157 = arith.constant 7.812500e-03 : f32
    %314 = vector.broadcast %cst_157 : f32 to vector<8x16x1xf32>
    %315 = arith.mulf %310, %314 : vector<8x16x1xf32>
    %cst_158 = arith.constant 7.812500e-03 : f32
    %316 = vector.broadcast %cst_158 : f32 to vector<8x16x1xf32>
    %317 = arith.mulf %313, %316 : vector<8x16x1xf32>
    %318 = arith.mulf %315, %315 : vector<8x16x1xf32>
    %319 = arith.subf %317, %318 : vector<8x16x1xf32>
    %cst_159 = arith.constant 0.000000e+00 : f32
    %320 = vector.broadcast %cst_159 : f32 to vector<8x16x1xf32>
    %321 = arith.maximumf %319, %320 : vector<8x16x1xf32>
    %322 = vector.broadcast %315 : vector<8x16x1xf32> to vector<8x16x128xf32>
    %323 = arith.subf %308, %322 : vector<8x16x128xf32>
    %cst_160 = arith.constant 9.99999974E-6 : f32
    %324 = vector.broadcast %cst_160 : f32 to vector<8x16x1xf32>
    %325 = arith.addf %321, %324 : vector<8x16x1xf32>
    %326 = math.rsqrt %325 : vector<8x16x1xf32>
    %327 = vector.broadcast %326 : vector<8x16x1xf32> to vector<8x16x128xf32>
    %328 = arith.mulf %323, %327 : vector<8x16x128xf32>
    %329 = vector.broadcast %1 : vector<1x1x128xf32> to vector<8x16x128xf32>
    %330 = arith.mulf %328, %329 : vector<8x16x128xf32>
    %331 = vector.broadcast %3 : vector<1x1x128xf32> to vector<8x16x128xf32>
    %332 = arith.addf %330, %331 : vector<8x16x128xf32>
    %c0_161 = arith.constant 0 : index
    %c0_162 = arith.constant 0 : index
    %c0_163 = arith.constant 0 : index
    %333 = vector.load %arg6[%c0_161, %c0_162, %c0_163] : memref<8x16x128xf32, #tpu.memory_space<vmem>>, vector<8x16x128xf32>
    tpu.vector_store %arg6[%c0_161, %c0_162, %c0_163], %332 {strides = array<i32>} : memref<8x16x128xf32, #tpu.memory_space<vmem>>, vector<8x16x128xf32>,
    return
  }
  func.func @transform_0(%arg0: i32) -> (i32, i32, i32) {
    %c1_i32 = arith.constant 1 : i32
    %c0_i32 = arith.constant 0 : i32
    %c0_i32_0 = arith.constant 0 : i32
    return %c1_i32, %arg0, %c0_i32 : i32, i32, i32
  }
  func.func @transform_1(%arg0: i32) -> (i32, i32) {
    %c0_i32 = arith.constant 0 : i32
    %c0_i32_0 = arith.constant 0 : i32
    %c0_i32_1 = arith.constant 0 : i32
    return %c0_i32, %c0_i32_0 : i32, i32
  }
  func.func @transform_2(%arg0: i32) -> i32 {
    %c0_i32 = arith.constant 0 : i32
    %c0_i32_0 = arith.constant 0 : i32
    return %c0_i32 : i32
  }
  func.func @transform_3(%arg0: i32) -> (i32, i32) {
    %c0_i32 = arith.constant 0 : i32
    %c0_i32_0 = arith.constant 0 : i32
    %c0_i32_1 = arith.constant 0 : i32
    return %c0_i32, %c0_i32_0 : i32, i32
  }
  func.func @transform_4(%arg0: i32) -> (i32, i32) {
    %c0_i32 = arith.constant 0 : i32
    %c0_i32_0 = arith.constant 0 : i32
    %c0_i32_1 = arith.constant 0 : i32
    return %c0_i32, %c0_i32_0 : i32, i32
  }
  func.func @transform_5(%arg0: i32) -> (i32, i32, i32) {
    %c1_i32 = arith.constant 1 : i32
    %c0_i32 = arith.constant 0 : i32
    %c0_i32_0 = arith.constant 0 : i32
    return %c1_i32, %arg0, %c0_i32 : i32, i32, i32
  }
}

</mosaic_0001>

<llo_original>
// kernel: transformer_decorator1_forward.1
$region0: #{transformer_decorator1_forward.1}
  #allocation0 [shape = 'u32[]', space=smem, size = 0x4, offset = 0x4, fixed_abs, tag = 'smem constant byte address 0x4 - core index']
  #allocation1 [shape = 'u32[72,128]{1,0:T(1,128)}', space=vmem, size = 0x9000, scoped, tag = 'internal scratch']
  %s0 = inlined_call_operand.hbm [shape: f32[16,16,128], index: 0, kind: input, shape index: {}, may-alias: {0,5}]
  %s1 = inlined_call_operand.hbm [shape: f32[8,8], index: 1, kind: input, shape index: {}]
  %s2 = inlined_call_operand.vmem [shape: f32[8], index: 2, kind: input, shape index: {}]
  %s3 = inlined_call_operand.vmem [shape: f32[1,128], index: 3, kind: input, shape index: {}]
  %s4 = inlined_call_operand.vmem [shape: f32[1,128], index: 4, kind: input, shape index: {}]
  %s5 = inlined_call_operand.hbm [shape: f32[16,16,128], index: 5, kind: output, shape index: {}, may-alias: {0,5}]
  %s6 = sld [smem:[#allocation0]]
  $region42: #{transformer_decorator1_forward.1} parent=0
    _
  %s8 = ssub.s32 1, %s6
  %s9 = scalar_select 0, %s8, %s6
  $region1: #{transformer_decorator1_forward.1} parent=0
    #allocation2 [shape = 'u8[65536]{0}', space=vmem, size = 0x10000, scoped, tag = 'input window, operand 0, single buffered']
    #allocation3 [shape = 's32[1]{0}', space=sflag, size = 0x4, scoped, tag = 'scoped memory for transformer_decorator1_forward.1']
    #allocation4 [shape = 's32[1]{0}', space=sflag, size = 0x4, scoped, tag = 'scoped memory for transformer_decorator1_forward.1']
    #allocation5 [shape = 's32[1]{0}', space=sflag, size = 0x4, scoped, tag = 'scoped memory for transformer_decorator1_forward.1']
    #allocation6 [shape = 's32[1]{0}', space=sflag, size = 0x4, scoped, tag = 'scoped memory for transformer_decorator1_forward.1']
    #allocation7 [shape = 'u8[4096]{0}', space=smem, size = 0x1000, scoped, tag = 'input window, operand 1, single buffered']
    #allocation8 [shape = 'u8[512]{0}', space=smem, size = 0x200, scoped, tag = 'input window, operand 2, single buffered']
    #allocation9 [shape = 'u8[65536]{0}', space=vmem, size = 0x10000, scoped, tag = 'output window, operand 0, single buffered']
    %10 = vsyncpa [#allocation3], 0
    %11 = vsyncpa [#allocation5], 0
    %12 = vsyncpa [#allocation6], 0
    %13 = vsyncpa [#allocation4], 0
    // Predicated region
    $region2: #{transformer_decorator1_forward.1} parent=1 // pred_check
      _
    $region3: #{transformer_decorator1_forward.1} parent=1 // pred_check_branch
      %15 = sbr.rel (0) target = $region5
    $region4: #{transformer_decorator1_forward.1} parent=1 // pred_region
      %17 = vsyncadd [#allocation3], 0
      %s18 = scalar_lea.hbm %s0, 128
      %s19 = sshll.u32 %s18, 4
      %s20 = int_to_ptr.hbm [resolvable:$true] %s19
      %s21 = sshll.u32 [#allocation2], 4
      %s22 = int_to_ptr.vmem [resolvable:$true] %s21
      %27 = dma.hbm_to_vmem [thread:$0]  %s20, 2048, %s22, [#allocation3], 128, 128, 8
    $region5: #{transformer_decorator1_forward.1} parent=1 // pred_fallthru
      _
    // Predicated region
    $region6: #{transformer_decorator1_forward.1} parent=1 // pred_check
      _
    $region7: #{transformer_decorator1_forward.1} parent=1 // pred_check_branch
      %29 = sbr.rel (0) target = $region9
    $region8: #{transformer_decorator1_forward.1} parent=1 // pred_region
      %31 = vsyncadd [#allocation5], 0
      %s33 = sshll.u32 %s1, 4
      %s34 = int_to_ptr.hbm [resolvable:$true] %s33
      %36 = dma.hbm_to_smem %s34, 128, [#allocation7], [#allocation5]
    $region9: #{transformer_decorator1_forward.1} parent=1 // pred_fallthru
      _
    // Predicated region
    $region10: #{transformer_decorator1_forward.1} parent=1 // pred_check
      _
    $region11: #{transformer_decorator1_forward.1} parent=1 // pred_check_branch
      %38 = sbr.rel (0) target = $region13
    $region12: #{transformer_decorator1_forward.1} parent=1 // pred_region
      %40 = vsyncadd [#allocation6], 0
      %s42 = sshll.u32 %s2, 4
      %s43 = int_to_ptr.vmem [resolvable:$true] %s42
      %45 = dma.vmem_to_smem %s43, 16, [#allocation8], [#allocation6]
    $region13: #{transformer_decorator1_forward.1} parent=1 // pred_fallthru
      _
    // Predicated region
    $region14: #{transformer_decorator1_forward.1} parent=1 // pred_check
      _
    $region15: #{transformer_decorator1_forward.1} parent=1 // pred_check_branch
      %47 = sbr.rel (0) target = $region17
    $region16: #{transformer_decorator1_forward.1} parent=1 // pred_region
      _
    $region17: #{transformer_decorator1_forward.1} parent=1 // pred_fallthru
      _
    // Predicated region
    $region18: #{transformer_decorator1_forward.1} parent=1 // pred_check
      _
    $region19: #{transformer_decorator1_forward.1} parent=1 // pred_check_branch
      %49 = sbr.rel (0) target = $region21
    $region20: #{transformer_decorator1_forward.1} parent=1 // pred_region
      _
    $region21: #{transformer_decorator1_forward.1} parent=1 // pred_fallthru
      _
    // Predicated region
    $region22: #{transformer_decorator1_forward.1} parent=1 // pred_check
      _
    $region23: #{transformer_decorator1_forward.1} parent=1 // pred_check_branch
      %51 = sbr.rel (0) target = $region25
    $region24: #{transformer_decorator1_forward.1} parent=1 // pred_region
      %53 = dma.done [#allocation3], 2048
    $region25: #{transformer_decorator1_forward.1} parent=1 // pred_fallthru
      _
    // Predicated region
    $region26: #{transformer_decorator1_forward.1} parent=1 // pred_check
      _
    $region27: #{transformer_decorator1_forward.1} parent=1 // pred_check_branch
      %55 = sbr.rel (0) target = $region29
    $region28: #{transformer_decorator1_forward.1} parent=1 // pred_region
      %57 = dma.done [#allocation5], 128
    $region29: #{transformer_decorator1_forward.1} parent=1 // pred_fallthru
      _
    // Predicated region
    $region30: #{transformer_decorator1_forward.1} parent=1 // pred_check
      _
    $region31: #{transformer_decorator1_forward.1} parent=1 // pred_check_branch
      %59 = sbr.rel (0) target = $region33
    $region32: #{transformer_decorator1_forward.1} parent=1 // pred_region
      %61 = dma.done [#allocation6], 16
    $region33: #{transformer_decorator1_forward.1} parent=1 // pred_fallthru
      _
    %62 = sfence
    %v63 = vld [vmem:[%s3] sm:$0x1]
    %v64 = vld [vmem:[%s4] sm:$0x1]
    %v65 = vld [vmem:[#allocation2] sm:$0xff]
    %v66 = vld [vmem:[#allocation2 + $0x8] sm:$0xff]
    %s67 = scalar_lea.vmem [#allocation2], 16
    %v68 = vld [vmem:[%s67] sm:$0xff]
    %v69 = vld [vmem:[%s67 + $0x8] sm:$0xff]
    %s70 = scalar_lea.vmem [#allocation2], 32
    %v71 = vld [vmem:[%s70] sm:$0xff]
    %v72 = vld [vmem:[%s70 + $0x8] sm:$0xff]
    %s73 = scalar_lea.vmem [#allocation2], 48
    %v74 = vld [vmem:[%s73] sm:$0xff]
    %v75 = vld [vmem:[%s73 + $0x8] sm:$0xff]
    %s76 = scalar_lea.vmem [#allocation2], 64
    %v77 = vld [vmem:[%s76] sm:$0xff]
    %v78 = vld [vmem:[%s76 + $0x8] sm:$0xff]
    %s79 = scalar_lea.vmem [#allocation2], 80
    %v80 = vld [vmem:[%s79] sm:$0xff]
    %v81 = vld [vmem:[%s79 + $0x8] sm:$0xff]
    %s82 = scalar_lea.vmem [#allocation2], 96
    %v83 = vld [vmem:[%s82] sm:$0xff]
    %v84 = vld [vmem:[%s82 + $0x8] sm:$0xff]
    %s85 = scalar_lea.vmem [#allocation2], 112
    %v86 = vld [vmem:[%s85] sm:$0xff]
    %v87 = vld [vmem:[%s85 + $0x8] sm:$0xff]
    %s88 = sld [smem:[#allocation8]]
    %s89 = sld [smem:[#allocation7]]
    %v90 = vstv %s89
    %v91 = vmul.f32 %v90, %v65
    %v92 = vmul.f32 %v90, %v66
    %v93 = vstv %s88
    %v94 = vadd.f32 %v93, %v91
    %v95 = vadd.f32 %v93, %v92
    %s96 = sld [smem:[#allocation7 + $0x1]]
    %v97 = vstv %s96
    %v98 = vmul.f32 %v97, %v68
    %v99 = vmul.f32 %v97, %v69
    %v100 = vadd.f32 %v94, %v98
    %v101 = vadd.f32 %v95, %v99
    %s102 = sld [smem:[#allocation7 + $0x2]]
    %v103 = vstv %s102
    %v104 = vmul.f32 %v103, %v71
    %v105 = vmul.f32 %v103, %v72
    %v106 = vadd.f32 %v100, %v104
    %v107 = vadd.f32 %v101, %v105
    %s108 = sld [smem:[#allocation7 + $0x3]]
    %v109 = vstv %s108
    %v110 = vmul.f32 %v109, %v74
    %v111 = vmul.f32 %v109, %v75
    %v112 = vadd.f32 %v106, %v110
    %v113 = vadd.f32 %v107, %v111
    %s114 = sld [smem:[#allocation7 + $0x4]]
    %v115 = vstv %s114
    %v116 = vmul.f32 %v115, %v77
    %v117 = vmul.f32 %v115, %v78
    %v118 = vadd.f32 %v112, %v116
    %v119 = vadd.f32 %v113, %v117
    %s120 = sld [smem:[#allocation7 + $0x5]]
    %v121 = vstv %s120
    %v122 = vmul.f32 %v121, %v80
    %v123 = vmul.f32 %v121, %v81
    %v124 = vadd.f32 %v118, %v122
    %v125 = vadd.f32 %v119, %v123
    %s126 = sld [smem:[#allocation7 + $0x6]]
    %v127 = vstv %s126
    %v128 = vmul.f32 %v127, %v83
    %v129 = vmul.f32 %v127, %v84
    %v130 = vadd.f32 %v124, %v128
    %v131 = vadd.f32 %v125, %v129
    %s132 = sld [smem:[#allocation7 + $0x7]]
    %v133 = vstv %s132
    %v134 = vmul.f32 %v133, %v86
    %v135 = vmul.f32 %v133, %v87
    %v136 = vadd.f32 %v130, %v134
    %v137 = vadd.f32 %v131, %v135
    %v138 = vadd.f32 %v65, %v136
    %v139 = vadd.f32 %v66, %v137
    %s140 = sld [smem:[#allocation8 + $0x1]]
    %s141 = sld [smem:[#allocation7 + $0x80]]
    %v142 = vstv %s141
    %v143 = vmul.f32 %v142, %v65
    %v144 = vmul.f32 %v142, %v66
    %v145 = vstv %s140
    %v146 = vadd.f32 %v145, %v143
    %v147 = vadd.f32 %v145, %v144
    %s148 = sld [smem:[#allocation7 + $0x81]]
    %v149 = vstv %s148
    %v150 = vmul.f32 %v149, %v68
    %v151 = vmul.f32 %v149, %v69
    %v152 = vadd.f32 %v146, %v150
    %v153 = vadd.f32 %v147, %v151
    %s154 = sld [smem:[#allocation7 + $0x82]]
    %v155 = vstv %s154
    %v156 = vmul.f32 %v155, %v71
    %v157 = vmul.f32 %v155, %v72
    %v158 = vadd.f32 %v152, %v156
    %v159 = vadd.f32 %v153, %v157
    %s160 = sld [smem:[#allocation7 + $0x83]]
    %v161 = vstv %s160
    %v162 = vmul.f32 %v161, %v74
    %v163 = vmul.f32 %v161, %v75
    %v164 = vadd.f32 %v158, %v162
    %v165 = vadd.f32 %v159, %v163
    %s166 = sld [smem:[#allocation7 + $0x84]]
    %v167 = vstv %s166
    %v168 = vmul.f32 %v167, %v77
    %v169 = vmul.f32 %v167, %v78
    %v170 = vadd.f32 %v164, %v168
    %v171 = vadd.f32 %v165, %v169
    %s172 = sld [smem:[#allocation7 + $0x85]]
    %v173 = vstv %s172
    %v174 = vmul.f32 %v173, %v80
    %v175 = vmul.f32 %v173, %v81
    %v176 = vadd.f32 %v170, %v174
    %v177 = vadd.f32 %v171, %v175
    %s178 = sld [smem:[#allocation7 + $0x86]]
    %v179 = vstv %s178
    %v180 = vmul.f32 %v179, %v83
    %v181 = vmul.f32 %v179, %v84
    %v182 = vadd.f32 %v176, %v180
    %v183 = vadd.f32 %v177, %v181
    %s184 = sld [smem:[#allocation7 + $0x87]]
    %v185 = vstv %s184
    %v186 = vmul.f32 %v185, %v86
    %v187 = vmul.f32 %v185, %v87
    %v188 = vadd.f32 %v182, %v186
    %v189 = vadd.f32 %v183, %v187
    %v190 = vadd.f32 %v68, %v188
    %v191 = vadd.f32 %v69, %v189
    %s192 = sld [smem:[#allocation8 + $0x2]]
    %s193 = sld [smem:[#allocation7 + $0x100]]
    %v194 = vstv %s193
    %v195 = vmul.f32 %v194, %v65
    %v196 = vmul.f32 %v194, %v66
    %v197 = vstv %s192
    %v198 = vadd.f32 %v197, %v195
    %v199 = vadd.f32 %v197, %v196
    %s200 = sld [smem:[#allocation7 + $0x101]]
    %v201 = vstv %s200
    %v202 = vmul.f32 %v201, %v68
    %v203 = vmul.f32 %v201, %v69
    %v204 = vadd.f32 %v198, %v202
    %v205 = vadd.f32 %v199, %v203
    %s206 = sld [smem:[#allocation7 + $0x102]]
    %v207 = vstv %s206
    %v208 = vmul.f32 %v207, %v71
    %v209 = vmul.f32 %v207, %v72
    %v210 = vadd.f32 %v204, %v208
    %v211 = vadd.f32 %v205, %v209
    %s212 = sld [smem:[#allocation7 + $0x103]]
    %v213 = vstv %s212
    %v214 = vmul.f32 %v213, %v74
    %v215 = vmul.f32 %v213, %v75
    %v216 = vadd.f32 %v210, %v214
    %v217 = vadd.f32 %v211, %v215
    %s218 = sld [smem:[#allocation7 + $0x104]]
    %v219 = vstv %s218
    %v220 = vmul.f32 %v219, %v77
    %v221 = vmul.f32 %v219, %v78
    %v222 = vadd.f32 %v216, %v220
    %v223 = vadd.f32 %v217, %v221
    %s224 = sld [smem:[#allocation7 + $0x105]]
    %v225 = vstv %s224
    %v226 = vmul.f32 %v225, %v80
    %v227 = vmul.f32 %v225, %v81
    %v228 = vadd.f32 %v222, %v226
    %v229 = vadd.f32 %v223, %v227
    %s230 = sld [smem:[#allocation7 + $0x106]]
    %v231 = vstv %s230
    %v232 = vmul.f32 %v231, %v83
    %v233 = vmul.f32 %v231, %v84
    %v234 = vadd.f32 %v228, %v232
    %v235 = vadd.f32 %v229, %v233
    %s236 = sld [smem:[#allocation7 + $0x107]]
    %v237 = vstv %s236
    %v238 = vmul.f32 %v237, %v86
    %v239 = vmul.f32 %v237, %v87
    %v240 = vadd.f32 %v234, %v238
    %v241 = vadd.f32 %v235, %v239
    %v242 = vadd.f32 %v71, %v240
    %v243 = vadd.f32 %v72, %v241
    %s244 = sld [smem:[#allocation8 + $0x3]]
    %s245 = sld [smem:[#allocation7 + $0x180]]
    %v246 = vstv %s245
    %v247 = vmul.f32 %v246, %v65
    %v248 = vmul.f32 %v246, %v66
    %v249 = vstv %s244
    %v250 = vadd.f32 %v249, %v247
    %v251 = vadd.f32 %v249, %v248
    %s252 = sld [smem:[#allocation7 + $0x181]]
    %v253 = vstv %s252
    %v254 = vmul.f32 %v253, %v68
    %v255 = vmul.f32 %v253, %v69
    %v256 = vadd.f32 %v250, %v254
    %v257 = vadd.f32 %v251, %v255
    %s258 = sld [smem:[#allocation7 + $0x182]]
    %v259 = vstv %s258
    %v260 = vmul.f32 %v259, %v71
    %v261 = vmul.f32 %v259, %v72
    %v262 = vadd.f32 %v256, %v260
    %v263 = vadd.f32 %v257, %v261
    %s264 = sld [smem:[#allocation7 + $0x183]]
    %v265 = vstv %s264
    %v266 = vmul.f32 %v265, %v74
    %v267 = vmul.f32 %v265, %v75
    %v268 = vadd.f32 %v262, %v266
    %v269 = vadd.f32 %v263, %v267
    %s270 = sld [smem:[#allocation7 + $0x184]]
    %v271 = vstv %s270
    %v272 = vmul.f32 %v271, %v77
    %v273 = vmul.f32 %v271, %v78
    %v274 = vadd.f32 %v268, %v272
    %v275 = vadd.f32 %v269, %v273
    %s276 = sld [smem:[#allocation7 + $0x185]]
    %v277 = vstv %s276
    %v278 = vmul.f32 %v277, %v80
    %v279 = vmul.f32 %v277, %v81
    %v280 = vadd.f32 %v274, %v278
    %v281 = vadd.f32 %v275, %v279
    %s282 = sld [smem:[#allocation7 + $0x186]]
    %v283 = vstv %s282
    %v284 = vmul.f32 %v283, %v83
    %v285 = vmul.f32 %v283, %v84
    %v286 = vadd.f32 %v280, %v284
    %v287 = vadd.f32 %v281, %v285
    %s288 = sld [smem:[#allocation7 + $0x187]]
    %v289 = vstv %s288
    %v290 = vmul.f32 %v289, %v86
    %v291 = vmul.f32 %v289, %v87
    %v292 = vadd.f32 %v286, %v290
    %v293 = vadd.f32 %v287, %v291
    %v294 = vadd.f32 %v74, %v292
    %v295 = vadd.f32 %v75, %v293
    %s296 = sld [smem:[#allocation8 + $0x4]]
    %s297 = sld [smem:[#allocation7 + $0x200]]
    %v298 = vstv %s297
    %v299 = vmul.f32 %v298, %v65
    %v300 = vmul.f32 %v298, %v66
    %v301 = vstv %s296
    %v302 = vadd.f32 %v301, %v299
    %v303 = vadd.f32 %v301, %v300
    %s304 = sld [smem:[#allocation7 + $0x201]]
    %v305 = vstv %s304
    %v306 = vmul.f32 %v305, %v68
    %v307 = vmul.f32 %v305, %v69
    %v308 = vadd.f32 %v302, %v306
    %v309 = vadd.f32 %v303, %v307
    %s310 = sld [smem:[#allocation7 + $0x202]]
    %v311 = vstv %s310
    %v312 = vmul.f32 %v311, %v71
    %v313 = vmul.f32 %v311, %v72
    %v314 = vadd.f32 %v308, %v312
    %v315 = vadd.f32 %v309, %v313
    %s316 = sld [smem:[#allocation7 + $0x203]]
    %v317 = vstv %s316
    %v318 = vmul.f32 %v317, %v74
    %v319 = vmul.f32 %v317, %v75
    %v320 = vadd.f32 %v314, %v318
    %v321 = vadd.f32 %v315, %v319
    %s322 = sld [smem:[#allocation7 + $0x204]]
    %v323 = vstv %s322
    %v324 = vmul.f32 %v323, %v77
    %v325 = vmul.f32 %v323, %v78
    %v326 = vadd.f32 %v320, %v324
    %v327 = vadd.f32 %v321, %v325
    %s328 = sld [smem:[#allocation7 + $0x205]]
    %v329 = vstv %s328
    %v330 = vmul.f32 %v329, %v80
    %v331 = vmul.f32 %v329, %v81
    %v332 = vadd.f32 %v326, %v330
    %v333 = vadd.f32 %v327, %v331
    %s334 = sld [smem:[#allocation7 + $0x206]]
    %v335 = vstv %s334
    %v336 = vmul.f32 %v335, %v83
    %v337 = vmul.f32 %v335, %v84
    %v338 = vadd.f32 %v332, %v336
    %v339 = vadd.f32 %v333, %v337
    %s340 = sld [smem:[#allocation7 + $0x207]]
    %v341 = vstv %s340
    %v342 = vmul.f32 %v341, %v86
    %v343 = vmul.f32 %v341, %v87
    %v344 = vadd.f32 %v338, %v342
    %v345 = vadd.f32 %v339, %v343
    %v346 = vadd.f32 %v77, %v344
    %v347 = vadd.f32 %v78, %v345
    %s348 = sld [smem:[#allocation8 + $0x5]]
    %s349 = sld [smem:[#allocation7 + $0x280]]
    %v350 = vstv %s349
    %v351 = vmul.f32 %v350, %v65
    %v352 = vmul.f32 %v350, %v66
    %v353 = vstv %s348
    %v354 = vadd.f32 %v353, %v351
    %v355 = vadd.f32 %v353, %v352
    %s356 = sld [smem:[#allocation7 + $0x281]]
    %v357 = vstv %s356
    %v358 = vmul.f32 %v357, %v68
    %v359 = vmul.f32 %v357, %v69
    %v360 = vadd.f32 %v354, %v358
    %v361 = vadd.f32 %v355, %v359
    %s362 = sld [smem:[#allocation7 + $0x282]]
    %v363 = vstv %s362
    %v364 = vmul.f32 %v363, %v71
    %v365 = vmul.f32 %v363, %v72
    %v366 = vadd.f32 %v360, %v364
    %v367 = vadd.f32 %v361, %v365
    %s368 = sld [smem:[#allocation7 + $0x283]]
    %v369 = vstv %s368
    %v370 = vmul.f32 %v369, %v74
    %v371 = vmul.f32 %v369, %v75
    %v372 = vadd.f32 %v366, %v370
    %v373 = vadd.f32 %v367, %v371
    %s374 = sld [smem:[#allocation7 + $0x284]]
    %v375 = vstv %s374
    %v376 = vmul.f32 %v375, %v77
    %v377 = vmul.f32 %v375, %v78
    %v378 = vadd.f32 %v372, %v376
    %v379 = vadd.f32 %v373, %v377
    %s380 = sld [smem:[#allocation7 + $0x285]]
    %v381 = vstv %s380
    %v382 = vmul.f32 %v381, %v80
    %v383 = vmul.f32 %v381, %v81
    %v384 = vadd.f32 %v378, %v382
    %v385 = vadd.f32 %v379, %v383
    %s386 = sld [smem:[#allocation7 + $0x286]]
    %v387 = vstv %s386
    %v388 = vmul.f32 %v387, %v83
    %v389 = vmul.f32 %v387, %v84
    %v390 = vadd.f32 %v384, %v388
    %v391 = vadd.f32 %v385, %v389
    %s392 = sld [smem:[#allocation7 + $0x287]]
    %v393 = vstv %s392
    %v394 = vmul.f32 %v393, %v86
    %v395 = vmul.f32 %v393, %v87
    %v396 = vadd.f32 %v390, %v394
    %v397 = vadd.f32 %v391, %v395
    %v398 = vadd.f32 %v80, %v396
    %v399 = vadd.f32 %v81, %v397
    %s400 = sld [smem:[#allocation8 + $0x6]]
    %s401 = sld [smem:[#allocation7 + $0x300]]
    %v402 = vstv %s401
    %v403 = vmul.f32 %v402, %v65
    %v404 = vmul.f32 %v402, %v66
    %v405 = vstv %s400
    %v406 = vadd.f32 %v405, %v403
    %v407 = vadd.f32 %v405, %v404
    %s408 = sld [smem:[#allocation7 + $0x301]]
    %v409 = vstv %s408
    %v410 = vmul.f32 %v409, %v68
    %v411 = vmul.f32 %v409, %v69
    %v412 = vadd.f32 %v406, %v410
    %v413 = vadd.f32 %v407, %v411
    %s414 = sld [smem:[#allocation7 + $0x302]]
    %v415 = vstv %s414
    %v416 = vmul.f32 %v415, %v71
    %v417 = vmul.f32 %v415, %v72
    %v418 = vadd.f32 %v412, %v416
    %v419 = vadd.f32 %v413, %v417
    %s420 = sld [smem:[#allocation7 + $0x303]]
    %v421 = vstv %s420
    %v422 = vmul.f32 %v421, %v74
    %v423 = vmul.f32 %v421, %v75
    %v424 = vadd.f32 %v418, %v422
    %v425 = vadd.f32 %v419, %v423
    %s426 = sld [smem:[#allocation7 + $0x304]]
    %v427 = vstv %s426
    %v428 = vmul.f32 %v427, %v77
    %v429 = vmul.f32 %v427, %v78
    %v430 = vadd.f32 %v424, %v428
    %v431 = vadd.f32 %v425, %v429
    %s432 = sld [smem:[#allocation7 + $0x305]]
    %v433 = vstv %s432
    %v434 = vmul.f32 %v433, %v80
    %v435 = vmul.f32 %v433, %v81
    %v436 = vadd.f32 %v430, %v434
    %v437 = vadd.f32 %v431, %v435
    %s438 = sld [smem:[#allocation7 + $0x306]]
    %v439 = vstv %s438
    %v440 = vmul.f32 %v439, %v83
    %v441 = vmul.f32 %v439, %v84
    %v442 = vadd.f32 %v436, %v440
    %v443 = vadd.f32 %v437, %v441
    %s444 = sld [smem:[#allocation7 + $0x307]]
    %v445 = vstv %s444
    %v446 = vmul.f32 %v445, %v86
    %v447 = vmul.f32 %v445, %v87
    %v448 = vadd.f32 %v442, %v446
    %v449 = vadd.f32 %v443, %v447
    %v450 = vadd.f32 %v83, %v448
    %v451 = vadd.f32 %v84, %v449
    %s452 = sld [smem:[#allocation8 + $0x7]]
    %s453 = sld [smem:[#allocation7 + $0x380]]
    %v454 = vstv %s453
    %v455 = vmul.f32 %v454, %v65
    %v456 = vmul.f32 %v454, %v66
    %v457 = vstv %s452
    %v458 = vadd.f32 %v457, %v455
    %v459 = vadd.f32 %v457, %v456
    %s460 = sld [smem:[#allocation7 + $0x381]]
    %v461 = vstv %s460
    %v462 = vmul.f32 %v461, %v68
    %v463 = vmul.f32 %v461, %v69
    %v464 = vadd.f32 %v458, %v462
    %v465 = vadd.f32 %v459, %v463
    %s466 = sld [smem:[#allocation7 + $0x382]]
    %v467 = vstv %s466
    %v468 = vmul.f32 %v467, %v71
    %v469 = vmul.f32 %v467, %v72
    %v470 = vadd.f32 %v464, %v468
    %v471 = vadd.f32 %v465, %v469
    %s472 = sld [smem:[#allocation7 + $0x383]]
    %v473 = vstv %s472
    %v474 = vmul.f32 %v473, %v74
    %v475 = vmul.f32 %v473, %v75
    %v476 = vadd.f32 %v470, %v474
    %v477 = vadd.f32 %v471, %v475
    %s478 = sld [smem:[#allocation7 + $0x384]]
    %v479 = vstv %s478
    %v480 = vmul.f32 %v479, %v77
    %v481 = vmul.f32 %v479, %v78
    %v482 = vadd.f32 %v476, %v480
    %v483 = vadd.f32 %v477, %v481
    %s484 = sld [smem:[#allocation7 + $0x385]]
    %v485 = vstv %s484
    %v486 = vmul.f32 %v485, %v80
    %v487 = vmul.f32 %v485, %v81
    %v488 = vadd.f32 %v482, %v486
    %v489 = vadd.f32 %v483, %v487
    %s490 = sld [smem:[#allocation7 + $0x386]]
    %v491 = vstv %s490
    %v492 = vmul.f32 %v491, %v83
    %v493 = vmul.f32 %v491, %v84
    %v494 = vadd.f32 %v488, %v492
    %v495 = vadd.f32 %v489, %v493
    %s496 = sld [smem:[#allocation7 + $0x387]]
    %v497 = vstv %s496
    %v498 = vmul.f32 %v497, %v86
    %v499 = vmul.f32 %v497, %v87
    %v500 = vadd.f32 %v494, %v498
    %v501 = vadd.f32 %v495, %v499
    %v502 = vadd.f32 %v86, %v500
    %v503 = vadd.f32 %v87, %v501
    %504 = vadd.xlane.f32.xlu0 %v138
    %v505 = vpop.xlane.xlu0 %504
    %506 = vadd.xlane.f32.xlu0 %v139
    %v507 = vpop.xlane.xlu0 %506
    %508 = vadd.xlane.f32.xlu0 %v190
    %v509 = vpop.xlane.xlu0 %508
    %510 = vadd.xlane.f32.xlu0 %v191
    %v511 = vpop.xlane.xlu0 %510
    %512 = vadd.xlane.f32.xlu0 %v242
    %v513 = vpop.xlane.xlu0 %512
    %514 = vadd.xlane.f32.xlu0 %v243
    %v515 = vpop.xlane.xlu0 %514
    %516 = vadd.xlane.f32.xlu0 %v294
    %v517 = vpop.xlane.xlu0 %516
    %518 = vadd.xlane.f32.xlu0 %v295
    %v519 = vpop.xlane.xlu0 %518
    %520 = vadd.xlane.f32.xlu0 %v346
    %v521 = vpop.xlane.xlu0 %520
    %522 = vadd.xlane.f32.xlu0 %v347
    %v523 = vpop.xlane.xlu0 %522
    %524 = vadd.xlane.f32.xlu0 %v398
    %v525 = vpop.xlane.xlu0 %524
    %526 = vadd.xlane.f32.xlu0 %v399
    %v527 = vpop.xlane.xlu0 %526
    %528 = vadd.xlane.f32.xlu0 %v450
    %v529 = vpop.xlane.xlu0 %528
    %530 = vadd.xlane.f32.xlu0 %v451
    %v531 = vpop.xlane.xlu0 %530
    %532 = vadd.xlane.f32.xlu0 %v502
    %v533 = vpop.xlane.xlu0 %532
    %534 = vadd.xlane.f32.xlu0 %v503
    %v535 = vpop.xlane.xlu0 %534
    %v536 = vmul.f32 %v138, %v138
    %v537 = vmul.f32 %v139, %v139
    %v538 = vmul.f32 %v190, %v190
    %v539 = vmul.f32 %v191, %v191
    %v540 = vmul.f32 %v242, %v242
    %v541 = vmul.f32 %v243, %v243
    %v542 = vmul.f32 %v294, %v294
    %v543 = vmul.f32 %v295, %v295
    %v544 = vmul.f32 %v346, %v346
    %v545 = vmul.f32 %v347, %v347
    %v546 = vmul.f32 %v398, %v398
    %v547 = vmul.f32 %v399, %v399
    %v548 = vmul.f32 %v450, %v450
    %v549 = vmul.f32 %v451, %v451
    %v550 = vmul.f32 %v502, %v502
    %v551 = vmul.f32 %v503, %v503
    %552 = vadd.xlane.f32.xlu0 %v536
    %v553 = vpop.xlane.xlu0 %552
    %554 = vadd.xlane.f32.xlu0 %v537
    %v555 = vpop.xlane.xlu0 %554
    %556 = vadd.xlane.f32.xlu0 %v538
    %v557 = vpop.xlane.xlu0 %556
    %558 = vadd.xlane.f32.xlu0 %v539
    %v559 = vpop.xlane.xlu0 %558
    %560 = vadd.xlane.f32.xlu0 %v540
    %v561 = vpop.xlane.xlu0 %560
    %562 = vadd.xlane.f32.xlu0 %v541
    %v563 = vpop.xlane.xlu0 %562
    %564 = vadd.xlane.f32.xlu0 %v542
    %v565 = vpop.xlane.xlu0 %564
    %566 = vadd.xlane.f32.xlu0 %v543
    %v567 = vpop.xlane.xlu0 %566
    %568 = vadd.xlane.f32.xlu0 %v544
    %v569 = vpop.xlane.xlu0 %568
    %570 = vadd.xlane.f32.xlu0 %v545
    %v571 = vpop.xlane.xlu0 %570
    %572 = vadd.xlane.f32.xlu0 %v546
    %v573 = vpop.xlane.xlu0 %572
    %574 = vadd.xlane.f32.xlu0 %v547
    %v575 = vpop.xlane.xlu0 %574
    %576 = vadd.xlane.f32.xlu0 %v548
    %v577 = vpop.xlane.xlu0 %576
    %578 = vadd.xlane.f32.xlu0 %v549
    %v579 = vpop.xlane.xlu0 %578
    %580 = vadd.xlane.f32.xlu0 %v550
    %v581 = vpop.xlane.xlu0 %580
    %582 = vadd.xlane.f32.xlu0 %v551
    %v583 = vpop.xlane.xlu0 %582
    %v584 = vmul.f32 %v505, 0.0078125
    %v585 = vmul.f32 %v507, 0.0078125
    %v586 = vmul.f32 %v509, 0.0078125
    %v587 = vmul.f32 %v511, 0.0078125
    %v588 = vmul.f32 %v513, 0.0078125
    %v589 = vmul.f32 %v515, 0.0078125
    %v590 = vmul.f32 %v517, 0.0078125
    %v591 = vmul.f32 %v519, 0.0078125
    %v592 = vmul.f32 %v521, 0.0078125
    %v593 = vmul.f32 %v523, 0.0078125
    %v594 = vmul.f32 %v525, 0.0078125
    %v595 = vmul.f32 %v527, 0.0078125
    %v596 = vmul.f32 %v529, 0.0078125
    %v597 = vmul.f32 %v531, 0.0078125
    %v598 = vmul.f32 %v533, 0.0078125
    %v599 = vmul.f32 %v535, 0.0078125
    %v600 = vmul.f32 %v553, 0.0078125
    %v601 = vmul.f32 %v555, 0.0078125
    %v602 = vmul.f32 %v557, 0.0078125
    %v603 = vmul.f32 %v559, 0.0078125
    %v604 = vmul.f32 %v561, 0.0078125
    %v605 = vmul.f32 %v563, 0.0078125
    %v606 = vmul.f32 %v565, 0.0078125
    %v607 = vmul.f32 %v567, 0.0078125
    %v608 = vmul.f32 %v569, 0.0078125
    %v609 = vmul.f32 %v571, 0.0078125
    %v610 = vmul.f32 %v573, 0.0078125
    %v611 = vmul.f32 %v575, 0.0078125
    %v612 = vmul.f32 %v577, 0.0078125
    %v613 = vmul.f32 %v579, 0.0078125
    %v614 = vmul.f32 %v581, 0.0078125
    %v615 = vmul.f32 %v583, 0.0078125
    %v616 = vmul.f32 %v584, %v584
    %v617 = vmul.f32 %v585, %v585
    %v618 = vmul.f32 %v586, %v586
    %v619 = vmul.f32 %v587, %v587
    %v620 = vmul.f32 %v588, %v588
    %v621 = vmul.f32 %v589, %v589
    %v622 = vmul.f32 %v590, %v590
    %v623 = vmul.f32 %v591, %v591
    %v624 = vmul.f32 %v592, %v592
    %v625 = vmul.f32 %v593, %v593
    %v626 = vmul.f32 %v594, %v594
    %v627 = vmul.f32 %v595, %v595
    %v628 = vmul.f32 %v596, %v596
    %v629 = vmul.f32 %v597, %v597
    %v630 = vmul.f32 %v598, %v598
    %v631 = vmul.f32 %v599, %v599
    %v632 = vsub.f32 %v600, %v616
    %v633 = vsub.f32 %v601, %v617
    %v634 = vsub.f32 %v602, %v618
    %v635 = vsub.f32 %v603, %v619
    %v636 = vsub.f32 %v604, %v620
    %v637 = vsub.f32 %v605, %v621
    %v638 = vsub.f32 %v606, %v622
    %v639 = vsub.f32 %v607, %v623
    %v640 = vsub.f32 %v608, %v624
    %v641 = vsub.f32 %v609, %v625
    %v642 = vsub.f32 %v610, %v626
    %v643 = vsub.f32 %v611, %v627
    %v644 = vsub.f32 %v612, %v628
    %v645 = vsub.f32 %v613, %v629
    %v646 = vsub.f32 %v614, %v630
    %v647 = vsub.f32 %v615, %v631
    %v648 = vmax.f32 %v632, 0.0
    %v649 = vmax.f32 %v633, 0.0
    %v650 = vmax.f32 %v634, 0.0
    %v651 = vmax.f32 %v635, 0.0
    %v652 = vmax.f32 %v636, 0.0
    %v653 = vmax.f32 %v637, 0.0
    %v654 = vmax.f32 %v638, 0.0
    %v655 = vmax.f32 %v639, 0.0
    %v656 = vmax.f32 %v640, 0.0
    %v657 = vmax.f32 %v641, 0.0
    %v658 = vmax.f32 %v642, 0.0
    %v659 = vmax.f32 %v643, 0.0
    %v660 = vmax.f32 %v644, 0.0
    %v661 = vmax.f32 %v645, 0.0
    %v662 = vmax.f32 %v646, 0.0
    %v663 = vmax.f32 %v647, 0.0
    %v664 = vsub.f32 %v138, %v584
    %v665 = vsub.f32 %v139, %v585
    %v666 = vsub.f32 %v190, %v586
    %v667 = vsub.f32 %v191, %v587
    %v668 = vsub.f32 %v242, %v588
    %v669 = vsub.f32 %v243, %v589
    %v670 = vsub.f32 %v294, %v590
    %v671 = vsub.f32 %v295, %v591
    %v672 = vsub.f32 %v346, %v592
    %v673 = vsub.f32 %v347, %v593
    %v674 = vsub.f32 %v398, %v594
    %v675 = vsub.f32 %v399, %v595
    %v676 = vsub.f32 %v450, %v596
    %v677 = vsub.f32 %v451, %v597
    %v678 = vsub.f32 %v502, %v598
    %v679 = vsub.f32 %v503, %v599
    %v680 = vadd.f32 %v648, 1e-05
    %v681 = vadd.f32 %v649, 1e-05
    %v682 = vadd.f32 %v650, 1e-05
    %v683 = vadd.f32 %v651, 1e-05
    %v684 = vadd.f32 %v652, 1e-05
    %v685 = vadd.f32 %v653, 1e-05
    %v686 = vadd.f32 %v654, 1e-05
    %v687 = vadd.f32 %v655, 1e-05
    %v688 = vadd.f32 %v656, 1e-05
    %v689 = vadd.f32 %v657, 1e-05
    %v690 = vadd.f32 %v658, 1e-05
    %v691 = vadd.f32 %v659, 1e-05
    %v692 = vadd.f32 %v660, 1e-05
    %v693 = vadd.f32 %v661, 1e-05
    %v694 = vadd.f32 %v662, 1e-05
    %v695 = vadd.f32 %v663, 1e-05
    %v696 = vrsqrt.pop %v680
    %v697 = vmul.f32 %v696, %v680
    %v698 = vmul.f32 %v697, %v696
    %v699 = vmul.f32 0.5, %v698
    %v700 = vsub.f32 1.5, %v699
    %v701 = vmul.f32 %v696, %v700
    %vm702 = vweird.f32 %v680
    %vm703 = vweird.f32 %v696
    %vm704 = vmor %vm702, %vm703
    %v705 = vsel %vm704, %v696, %v701
    %v706 = vrsqrt.pop %v681
    %v707 = vmul.f32 %v706, %v681
    %v708 = vmul.f32 %v707, %v706
    %v709 = vmul.f32 0.5, %v708
    %v710 = vsub.f32 1.5, %v709
    %v711 = vmul.f32 %v706, %v710
    %vm712 = vweird.f32 %v681
    %vm713 = vweird.f32 %v706
    %vm714 = vmor %vm712, %vm713
    %v715 = vsel %vm714, %v706, %v711
    %v716 = vrsqrt.pop %v682
    %v717 = vmul.f32 %v716, %v682
    %v718 = vmul.f32 %v717, %v716
    %v719 = vmul.f32 0.5, %v718
    %v720 = vsub.f32 1.5, %v719
    %v721 = vmul.f32 %v716, %v720
    %vm722 = vweird.f32 %v682
    %vm723 = vweird.f32 %v716
    %vm724 = vmor %vm722, %vm723
    %v725 = vsel %vm724, %v716, %v721
    %v726 = vrsqrt.pop %v683
    %v727 = vmul.f32 %v726, %v683
    %v728 = vmul.f32 %v727, %v726
    %v729 = vmul.f32 0.5, %v728
    %v730 = vsub.f32 1.5, %v729
    %v731 = vmul.f32 %v726, %v730
    %vm732 = vweird.f32 %v683
    %vm733 = vweird.f32 %v726
    %vm734 = vmor %vm732, %vm733
    %v735 = vsel %vm734, %v726, %v731
    %v736 = vrsqrt.pop %v684
    %v737 = vmul.f32 %v736, %v684
    %v738 = vmul.f32 %v737, %v736
    %v739 = vmul.f32 0.5, %v738
    %v740 = vsub.f32 1.5, %v739
    %v741 = vmul.f32 %v736, %v740
    %vm742 = vweird.f32 %v684
    %vm743 = vweird.f32 %v736
    %vm744 = vmor %vm742, %vm743
    %v745 = vsel %vm744, %v736, %v741
    %v746 = vrsqrt.pop %v685
    %v747 = vmul.f32 %v746, %v685
    %v748 = vmul.f32 %v747, %v746
    %v749 = vmul.f32 0.5, %v748
    %v750 = vsub.f32 1.5, %v749
    %v751 = vmul.f32 %v746, %v750
    %vm752 = vweird.f32 %v685
    %vm753 = vweird.f32 %v746
    %vm754 = vmor %vm752, %vm753
    %v755 = vsel %vm754, %v746, %v751
    %v756 = vrsqrt.pop %v686
    %v757 = vmul.f32 %v756, %v686
    %v758 = vmul.f32 %v757, %v756
    %v759 = vmul.f32 0.5, %v758
    %v760 = vsub.f32 1.5, %v759
    %v761 = vmul.f32 %v756, %v760
    %vm762 = vweird.f32 %v686
    %vm763 = vweird.f32 %v756
    %vm764 = vmor %vm762, %vm763
    %v765 = vsel %vm764, %v756, %v761
    %v766 = vrsqrt.pop %v687
    %v767 = vmul.f32 %v766, %v687
    %v768 = vmul.f32 %v767, %v766
    %v769 = vmul.f32 0.5, %v768
    %v770 = vsub.f32 1.5, %v769
    %v771 = vmul.f32 %v766, %v770
    %vm772 = vweird.f32 %v687
    %vm773 = vweird.f32 %v766
    %vm774 = vmor %vm772, %vm773
    %v775 = vsel %vm774, %v766, %v771
    %v776 = vrsqrt.pop %v688
    %v777 = vmul.f32 %v776, %v688
    %v778 = vmul.f32 %v777, %v776
    %v779 = vmul.f32 0.5, %v778
    %v780 = vsub.f32 1.5, %v779
    %v781 = vmul.f32 %v776, %v780
    %vm782 = vweird.f32 %v688
    %vm783 = vweird.f32 %v776
    %vm784 = vmor %vm782, %vm783
    %v785 = vsel %vm784, %v776, %v781
    %v786 = vrsqrt.pop %v689
    %v787 = vmul.f32 %v786, %v689
    %v788 = vmul.f32 %v787, %v786
    %v789 = vmul.f32 0.5, %v788
    %v790 = vsub.f32 1.5, %v789
    %v791 = vmul.f32 %v786, %v790
    %vm792 = vweird.f32 %v689
    %vm793 = vweird.f32 %v786
    %vm794 = vmor %vm792, %vm793
    %v795 = vsel %vm794, %v786, %v791
    %v796 = vrsqrt.pop %v690
    %v797 = vmul.f32 %v796, %v690
    %v798 = vmul.f32 %v797, %v796
    %v799 = vmul.f32 0.5, %v798
    %v800 = vsub.f32 1.5, %v799
    %v801 = vmul.f32 %v796, %v800
    %vm802 = vweird.f32 %v690
    %vm803 = vweird.f32 %v796
    %vm804 = vmor %vm802, %vm803
    %v805 = vsel %vm804, %v796, %v801
    %v806 = vrsqrt.pop %v691
    %v807 = vmul.f32 %v806, %v691
    %v808 = vmul.f32 %v807, %v806
    %v809 = vmul.f32 0.5, %v808
    %v810 = vsub.f32 1.5, %v809
    %v811 = vmul.f32 %v806, %v810
    %vm812 = vweird.f32 %v691
    %vm813 = vweird.f32 %v806
    %vm814 = vmor %vm812, %vm813
    %v815 = vsel %vm814, %v806, %v811
    %v816 = vrsqrt.pop %v692
    %v817 = vmul.f32 %v816, %v692
    %v818 = vmul.f32 %v817, %v816
    %v819 = vmul.f32 0.5, %v818
    %v820 = vsub.f32 1.5, %v819
    %v821 = vmul.f32 %v816, %v820
    %vm822 = vweird.f32 %v692
    %vm823 = vweird.f32 %v816
    %vm824 = vmor %vm822, %vm823
    %v825 = vsel %vm824, %v816, %v821
    %v826 = vrsqrt.pop %v693
    %v827 = vmul.f32 %v826, %v693
    %v828 = vmul.f32 %v827, %v826
    %v829 = vmul.f32 0.5, %v828
    %v830 = vsub.f32 1.5, %v829
    %v831 = vmul.f32 %v826, %v830
    %vm832 = vweird.f32 %v693
    %vm833 = vweird.f32 %v826
    %vm834 = vmor %vm832, %vm833
    %v835 = vsel %vm834, %v826, %v831
    %v836 = vrsqrt.pop %v694
    %v837 = vmul.f32 %v836, %v694
    %v838 = vmul.f32 %v837, %v836
    %v839 = vmul.f32 0.5, %v838
    %v840 = vsub.f32 1.5, %v839
    %v841 = vmul.f32 %v836, %v840
    %vm842 = vweird.f32 %v694
    %vm843 = vweird.f32 %v836
    %vm844 = vmor %vm842, %vm843
    %v845 = vsel %vm844, %v836, %v841
    %v846 = vrsqrt.pop %v695
    %v847 = vmul.f32 %v846, %v695
    %v848 = vmul.f32 %v847, %v846
    %v849 = vmul.f32 0.5, %v848
    %v850 = vsub.f32 1.5, %v849
    %v851 = vmul.f32 %v846, %v850
    %vm852 = vweird.f32 %v695
    %vm853 = vweird.f32 %v846
    %vm854 = vmor %vm852, %vm853
    %v855 = vsel %vm854, %v846, %v851
    %v856 = vmul.f32 %v664, %v705
    %v857 = vmul.f32 %v665, %v715
    %v858 = vmul.f32 %v666, %v725
    %v859 = vmul.f32 %v667, %v735
    %v860 = vmul.f32 %v668, %v745
    %v861 = vmul.f32 %v669, %v755
    %v862 = vmul.f32 %v670, %v765
    %v863 = vmul.f32 %v671, %v775
    %v864 = vmul.f32 %v672, %v785
    %v865 = vmul.f32 %v673, %v795
    %v866 = vmul.f32 %v674, %v805
    %v867 = vmul.f32 %v675, %v815
    %v868 = vmul.f32 %v676, %v825
    %v869 = vmul.f32 %v677, %v835
    %v870 = vmul.f32 %v678, %v845
    %v871 = vmul.f32 %v679, %v855
    %v873 = vperm.slane %v63, 0
    %v875 = vmul.f32 %v856, %v873
    %v876 = vmul.f32 %v857, %v873
    %v877 = vmul.f32 %v858, %v873
    %v878 = vmul.f32 %v859, %v873
    %v879 = vmul.f32 %v860, %v873
    %v880 = vmul.f32 %v861, %v873
    %v881 = vmul.f32 %v862, %v873
    %v882 = vmul.f32 %v863, %v873
    %v883 = vmul.f32 %v864, %v873
    %v884 = vmul.f32 %v865, %v873
    %v885 = vmul.f32 %v866, %v873
    %v886 = vmul.f32 %v867, %v873
    %v887 = vmul.f32 %v868, %v873
    %v888 = vmul.f32 %v869, %v873
    %v889 = vmul.f32 %v870, %v873
    %v890 = vmul.f32 %v871, %v873
    %v892 = vperm.slane %v64, 0
    %v894 = vadd.f32 %v875, %v892
    %v895 = vadd.f32 %v876, %v892
    %v896 = vadd.f32 %v877, %v892
    %v897 = vadd.f32 %v878, %v892
    %v898 = vadd.f32 %v879, %v892
    %v899 = vadd.f32 %v880, %v892
    %v900 = vadd.f32 %v881, %v892
    %v901 = vadd.f32 %v882, %v892
    %v902 = vadd.f32 %v883, %v892
    %v903 = vadd.f32 %v884, %v892
    %v904 = vadd.f32 %v885, %v892
    %v905 = vadd.f32 %v886, %v892
    %v906 = vadd.f32 %v887, %v892
    %v907 = vadd.f32 %v888, %v892
    %v908 = vadd.f32 %v889, %v892
    %v909 = vadd.f32 %v890, %v892
    %910 = vst [vmem:[#allocation9] sm:$0xff] %v894
    %911 = vst [vmem:[#allocation9 + $0x8] sm:$0xff] %v895
    %912 = vst [vmem:[#allocation9 + $0x10] sm:$0xff] %v896
    %913 = vst [vmem:[#allocation9 + $0x18] sm:$0xff] %v897
    %914 = vst [vmem:[#allocation9 + $0x20] sm:$0xff] %v898
    %915 = vst [vmem:[#allocation9 + $0x28] sm:$0xff] %v899
    %916 = vst [vmem:[#allocation9 + $0x30] sm:$0xff] %v900
    %917 = vst [vmem:[#allocation9 + $0x38] sm:$0xff] %v901
    %918 = vst [vmem:[#allocation9 + $0x40] sm:$0xff] %v902
    %919 = vst [vmem:[#allocation9 + $0x48] sm:$0xff] %v903
    %920 = vst [vmem:[#allocation9 + $0x50] sm:$0xff] %v904
    %921 = vst [vmem:[#allocation9 + $0x58] sm:$0xff] %v905
    %922 = vst [vmem:[#allocation9 + $0x60] sm:$0xff] %v906
    %923 = vst [vmem:[#allocation9 + $0x68] sm:$0xff] %v907
    %924 = vst [vmem:[#allocation9 + $0x70] sm:$0xff] %v908
    %925 = vst [vmem:[#allocation9 + $0x78] sm:$0xff] %v909
    // Predicated region
    $region34: #{transformer_decorator1_forward.1} parent=1 // pred_check
      _
    $region35: #{transformer_decorator1_forward.1} parent=1 // pred_check_branch
      %927 = sbr.rel (0) target = $region37
    $region36: #{transformer_decorator1_forward.1} parent=1 // pred_region
      %929 = vsyncadd [#allocation4], 0
      %s930 = scalar_lea.hbm %s5, 128
      %s931 = sshll.u32 [#allocation9], 4
      %s932 = int_to_ptr.vmem [resolvable:$true] %s931
      %s933 = sshll.u32 %s930, 4
      %s934 = int_to_ptr.hbm [resolvable:$true] %s933
      %939 = dma.vmem_to_hbm [thread:$0]  %s932, 2048, %s934, [#allocation4], 128, 128, 8
    $region37: #{transformer_decorator1_forward.1} parent=1 // pred_fallthru
      _
    // Predicated region
    $region38: #{transformer_decorator1_forward.1} parent=1 // pred_check
      _
    $region39: #{transformer_decorator1_forward.1} parent=1 // pred_check_branch
      %941 = sbr.rel (0) target = $region41
    $region40: #{transformer_decorator1_forward.1} parent=1 // pred_region
      %943 = dma.done [#allocation4], 2048
    $region41: #{transformer_decorator1_forward.1} parent=1 // pred_fallthru
      _
    %944 = vsyncpa [#allocation3], 1
    %945 = vsyncpa [#allocation4], 1
    %946 = vsyncpa [#allocation5], 1
    %947 = vsyncpa [#allocation6], 1

</llo_original>
